<compile_context>
chip_gen: v7x
topology: tpu7x:2x2x1
jax: 0.10.0
libtpu: 0.0.40
codegen_flags: <defaults>
</compile_context>

<pallas_src>
import jax
import jax.numpy as jnp
from jax.experimental import pallas as pl
from jax.experimental.pallas import tpu as pltpu

# MLP dims from the PyTorch module: input_dim -> 768 -> 256 -> 64 -> 1
H1, H2, H3, H4 = 768, 256, 64, 1
H3P, H4P = 128, 128  # lane-padded widths for the narrow tail layers


def _round_up(n, m):
    return ((n + m - 1) // m) * m


def mlp_kernel(x_ref,
               w1_ref, b1_ref,
               w2_ref, b2_ref,
               w3_ref, b3_ref,
               w4_ref, b4_ref,
               o_ref):
    # Whole MLP fused and VMEM-resident for one batch tile.
    # MXU operands in bf16, accumulation in f32 (preferred_element_type).
    bf16 = jnp.bfloat16
    x = x_ref[...].astype(bf16)
    h = jnp.dot(x, w1_ref[...].astype(bf16),
                preferred_element_type=jnp.float32) + b1_ref[...]
    h = jnp.maximum(h, 0.0)
    h = jnp.dot(h.astype(bf16), w2_ref[...].astype(bf16),
                preferred_element_type=jnp.float32) + b2_ref[...]
    h = jnp.maximum(h, 0.0)
    # w3/b3 are zero-padded to 128 output lanes -> padded lanes stay ReLU(0)=0.
    h = jnp.dot(h.astype(bf16), w3_ref[...].astype(bf16),
                preferred_element_type=jnp.float32) + b3_ref[...]
    h = jnp.maximum(h, 0.0)
    # w4/b4 zero-padded to a (128, 128) matmul; only column 0 is meaningful.
    h = jnp.dot(h.astype(bf16), w4_ref[...].astype(bf16),
                preferred_element_type=jnp.float32) + b4_ref[...]
    o_ref[...] = h.astype(o_ref.dtype)  # lane-dense (tile_b, 128) store


def mlp_forward(x, params, *, tile_b=512):
    """x: (B, D_in) float32. params: dict of (in, out) weights and (1, out) biases."""
    B, D = x.shape
    w1, b1 = params["w1"], params["b1"]
    w2, b2 = params["w2"], params["b2"]
    w3, b3 = params["w3"], params["b3"]
    w4, b4 = params["w4"], params["b4"]

    # Zero-pad the narrow tail layers to full 128-lane width so the last two
    # matmuls and the final store stay lane-dense (unmasked vst, full MXU lanes).
    w3p = jnp.pad(w3, ((0, 0), (0, H3P - H3)))
    b3p = jnp.pad(b3, ((0, 0), (0, H3P - H3)))
    w4p = jnp.pad(w4, ((0, H3P - H3), (0, H4P - H4)))
    b4p = jnp.pad(b4, ((0, 0), (0, H4P - H4)))

    # Large batch tile amortizes per-step overhead and fills the MXU M rows;
    # cap it so tiny batches don't spend the whole tile on padding. All sizes
    # stay multiples of 8 (sublane granularity). VMEM footprint at tile_b=512
    # is ~a few MiB, safely under the default scoped limit on v5e/v6e/v7x.
    tile_b = max(8, min(_round_up(tile_b, 8), _round_up(B, 8)))
    grid = (pl.cdiv(B, tile_b),)

    def resident(shape):
        # Constant-index weights/biases: single buffer, resident across steps.
        return pl.BlockSpec(shape, lambda i: (0, 0),
                            pipeline_mode=pl.Buffered(1))

    out_pad = pl.pallas_call(
        mlp_kernel,
        out_shape=jax.ShapeDtypeStruct((B, H4P), jnp.float32),
        grid_spec=pltpu.PrefetchScalarGridSpec(
            num_scalar_prefetch=0,
            grid=grid,
            in_specs=[
                pl.BlockSpec((tile_b, D), lambda i: (i, 0)),   # x tile over batch
                resident(w1.shape), resident(b1.shape),
                resident(w2.shape), resident(b2.shape),
                resident(w3p.shape), resident(b3p.shape),
                resident(w4p.shape), resident(b4p.shape),
            ],
            out_specs=pl.BlockSpec((tile_b, H4P), lambda i: (i, 0)),
        ),
        compiler_params=pltpu.CompilerParams(
            dimension_semantics=("parallel",)),   # megacore-shard the batch axis
    )(x, w1, b1, w2, b2, w3p, b3p, w4p, b4p)

    # Slice the lane-dense slab back to the logical (B, 1) output.
    return out_pad[:, :H4]


def init_params(key, input_dim):
    """Deterministic synthetic init (shapes match the nn.Linear layers, transposed)."""
    dims = [(input_dim, H1), (H1, H2), (H2, H3), (H3, H4)]
    params = {}
    for idx, (din, dout) in enumerate(dims, start=1):
        key, kw, kb = jax.random.split(key, 3)
        bound = 1.0 / jnp.sqrt(din)
        params[f"w{idx}"] = jax.random.uniform(
            kw, (din, dout), jnp.float32, -bound, bound)
        params[f"b{idx}"] = jax.random.uniform(
            kb, (1, dout), jnp.float32, -bound, bound)
    return params


def mlp_reference_bf16(x, params):
    """Reference with the same bf16-operand / f32-accumulate matmul policy."""
    bf16 = jnp.bfloat16

    def lin(h, w, b):
        return jnp.dot(h.astype(bf16), w.astype(bf16),
                       preferred_element_type=jnp.float32) + b

    h = jnp.maximum(lin(x, params["w1"], params["b1"]), 0.0)
    h = jnp.maximum(lin(h, params["w2"], params["b2"]), 0.0)
    h = jnp.maximum(lin(h, params["w3"], params["b3"]), 0.0)
    return lin(h, params["w4"], params["b4"])


def mlp_reference_f32(x, params):
    h = jnp.maximum(x @ params["w1"] + params["b1"], 0.0)
    h = jnp.maximum(h @ params["w2"] + params["b2"], 0.0)
    h = jnp.maximum(h @ params["w3"] + params["b3"], 0.0)
    return h @ params["w4"] + params["b4"]


if __name__ == "__main__":
    key = jax.random.PRNGKey(0)
    key, kx = jax.random.split(key)

    batch, input_dim = 24, 32
    x = jax.random.normal(kx, (batch, input_dim), jnp.float32)
    params = init_params(key, input_dim)

    # Small tile here just to exercise a multi-step grid + partial last tile;
    # production callers should keep the default tile_b=512 (sweep 256-1024).
    out = mlp_forward(x, params, tile_b=16)
    out = jax.block_until_ready(out)

    ref_bf16 = mlp_reference_bf16(x, params)
    ref_f32 = mlp_reference_f32(x, params)

    assert out.shape == (batch, 1), out.shape
    assert jnp.allclose(out, ref_bf16, atol=2e-3, rtol=2e-3), \
        "mismatch vs bf16-matmul reference"
    assert jnp.allclose(out, ref_f32, atol=1e-1, rtol=1e-1), \
        "mismatch vs f32 reference (bf16 MXU operands)"

    print("KERNEL_OK")
</pallas_src>

<mosaic_0001>
module attributes {stable_mosaic.version = 11 : i64} {
  func.func @mlp_kernel(%arg0: i32, %arg1: memref<16x32xf32, #tpu.memory_space<vmem>>, %arg2: memref<32x768xf32, #tpu.memory_space<vmem>>, %arg3: memref<1x768xf32, #tpu.memory_space<vmem>>, %arg4: memref<768x256xf32, #tpu.memory_space<vmem>>, %arg5: memref<1x256xf32, #tpu.memory_space<vmem>>, %arg6: memref<256x128xf32, #tpu.memory_space<vmem>>, %arg7: memref<1x128xf32, #tpu.memory_space<vmem>>, %arg8: memref<128x128xf32, #tpu.memory_space<vmem>>, %arg9: memref<1x128xf32, #tpu.memory_space<vmem>>, %arg10: memref<16x128xf32, #tpu.memory_space<vmem>>) attributes {dimension_semantics = [#tpu.dimension_semantics<parallel>], iteration_bounds = array<i64: 2>, scalar_prefetch = 0 : i64, scratch_operands = 0 : i64, tpu.core_type = #tpu.core_type<tc>, window_params = [{transform_indices = @transform_0, window_bounds = array<i64: 16, 32>}, {pipeline_mode = #tpu.pipeline_mode<synchronous>, transform_indices = @transform_1, window_bounds = array<i64: 32, 768>}, {pipeline_mode = #tpu.pipeline_mode<synchronous>, transform_indices = @transform_2, window_bounds = array<i64: 1, 768>}, {pipeline_mode = #tpu.pipeline_mode<synchronous>, transform_indices = @transform_3, window_bounds = array<i64: 768, 256>}, {pipeline_mode = #tpu.pipeline_mode<synchronous>, transform_indices = @transform_4, window_bounds = array<i64: 1, 256>}, {pipeline_mode = #tpu.pipeline_mode<synchronous>, transform_indices = @transform_5, window_bounds = array<i64: 256, 128>}, {pipeline_mode = #tpu.pipeline_mode<synchronous>, transform_indices = @transform_6, window_bounds = array<i64: 1, 128>}, {pipeline_mode = #tpu.pipeline_mode<synchronous>, transform_indices = @transform_7, window_bounds = array<i64: 128, 128>}, {pipeline_mode = #tpu.pipeline_mode<synchronous>, transform_indices = @transform_8, window_bounds = array<i64: 1, 128>}, {transform_indices = @transform_9, window_bounds = array<i64: 16, 128>}]} {
    %c0 = arith.constant 0 : index
    %c0_0 = arith.constant 0 : index
    %0 = vector.load %arg1[%c0, %c0_0] : memref<16x32xf32, #tpu.memory_space<vmem>>, vector<16x32xf32>
    %1 = arith.truncf %0 : vector<16x32xf32> to vector<16x32xbf16>
    %c0_1 = arith.constant 0 : index
    %c0_2 = arith.constant 0 : index
    %2 = vector.load %arg2[%c0_1, %c0_2] : memref<32x768xf32, #tpu.memory_space<vmem>>, vector<32x768xf32>
    %3 = arith.truncf %2 : vector<32x768xf32> to vector<32x768xbf16>
    %cst = arith.constant dense<0.000000e+00> : vector<16x768xf32>
    %4 = tpu.matmul %1, %3, %cst {dimension_numbers = #tpu.dot_dimension_numbers<[1], [0], [0], [1], [0, 0, 1, 1], [], []>} : vector<16x32xbf16>, vector<32x768xbf16>, vector<16x768xf32> -> vector<16x768xf32>
    %c0_3 = arith.constant 0 : index
    %c0_4 = arith.constant 0 : index
    %5 = vector.load %arg3[%c0_3, %c0_4] : memref<1x768xf32, #tpu.memory_space<vmem>>, vector<1x768xf32>
    %6 = vector.broadcast %5 : vector<1x768xf32> to vector<16x768xf32>
    %7 = arith.addf %4, %6 : vector<16x768xf32>
    %cst_5 = arith.constant 0.000000e+00 : f32
    %8 = vector.broadcast %cst_5 : f32 to vector<16x768xf32>
    %9 = arith.maximumf %7, %8 : vector<16x768xf32>
    %10 = arith.truncf %9 : vector<16x768xf32> to vector<16x768xbf16>
    %c0_6 = arith.constant 0 : index
    %c0_7 = arith.constant 0 : index
    %11 = vector.load %arg4[%c0_6, %c0_7] : memref<768x256xf32, #tpu.memory_space<vmem>>, vector<768x256xf32>
    %12 = arith.truncf %11 : vector<768x256xf32> to vector<768x256xbf16>
    %cst_8 = arith.constant dense<0.000000e+00> : vector<16x256xf32>
    %13 = tpu.matmul %10, %12, %cst_8 {dimension_numbers = #tpu.dot_dimension_numbers<[1], [0], [0], [1], [0, 0, 1, 1], [], []>} : vector<16x768xbf16>, vector<768x256xbf16>, vector<16x256xf32> -> vector<16x256xf32>
    %c0_9 = arith.constant 0 : index
    %c0_10 = arith.constant 0 : index
    %14 = vector.load %arg5[%c0_9, %c0_10] : memref<1x256xf32, #tpu.memory_space<vmem>>, vector<1x256xf32>
    %15 = vector.broadcast %14 : vector<1x256xf32> to vector<16x256xf32>
    %16 = arith.addf %13, %15 : vector<16x256xf32>
    %cst_11 = arith.constant 0.000000e+00 : f32
    %17 = vector.broadcast %cst_11 : f32 to vector<16x256xf32>
    %18 = arith.maximumf %16, %17 : vector<16x256xf32>
    %19 = arith.truncf %18 : vector<16x256xf32> to vector<16x256xbf16>
    %c0_12 = arith.constant 0 : index
    %c0_13 = arith.constant 0 : index
    %20 = vector.load %arg6[%c0_12, %c0_13] : memref<256x128xf32, #tpu.memory_space<vmem>>, vector<256x128xf32>
    %21 = arith.truncf %20 : vector<256x128xf32> to vector<256x128xbf16>
    %cst_14 = arith.constant dense<0.000000e+00> : vector<16x128xf32>
    %22 = tpu.matmul %19, %21, %cst_14 {dimension_numbers = #tpu.dot_dimension_numbers<[1], [0], [0], [1], [0, 0, 1, 1], [], []>} : vector<16x256xbf16>, vector<256x128xbf16>, vector<16x128xf32> -> vector<16x128xf32>
    %c0_15 = arith.constant 0 : index
    %c0_16 = arith.constant 0 : index
    %23 = vector.load %arg7[%c0_15, %c0_16] : memref<1x128xf32, #tpu.memory_space<vmem>>, vector<1x128xf32>
    %24 = vector.broadcast %23 : vector<1x128xf32> to vector<16x128xf32>
    %25 = arith.addf %22, %24 : vector<16x128xf32>
    %cst_17 = arith.constant 0.000000e+00 : f32
    %26 = vector.broadcast %cst_17 : f32 to vector<16x128xf32>
    %27 = arith.maximumf %25, %26 : vector<16x128xf32>
    %28 = arith.truncf %27 : vector<16x128xf32> to vector<16x128xbf16>
    %c0_18 = arith.constant 0 : index
    %c0_19 = arith.constant 0 : index
    %29 = vector.load %arg8[%c0_18, %c0_19] : memref<128x128xf32, #tpu.memory_space<vmem>>, vector<128x128xf32>
    %30 = arith.truncf %29 : vector<128x128xf32> to vector<128x128xbf16>
    %cst_20 = arith.constant dense<0.000000e+00> : vector<16x128xf32>
    %31 = tpu.matmul %28, %30, %cst_20 {dimension_numbers = #tpu.dot_dimension_numbers<[1], [0], [0], [1], [0, 0, 1, 1], [], []>} : vector<16x128xbf16>, vector<128x128xbf16>, vector<16x128xf32> -> vector<16x128xf32>
    %c0_21 = arith.constant 0 : index
    %c0_22 = arith.constant 0 : index
    %32 = vector.load %arg9[%c0_21, %c0_22] : memref<1x128xf32, #tpu.memory_space<vmem>>, vector<1x128xf32>
    %33 = vector.broadcast %32 : vector<1x128xf32> to vector<16x128xf32>
    %34 = arith.addf %31, %33 : vector<16x128xf32>
    %c0_23 = arith.constant 0 : index
    %c0_24 = arith.constant 0 : index
    %35 = vector.load %arg10[%c0_23, %c0_24] : memref<16x128xf32, #tpu.memory_space<vmem>>, vector<16x128xf32>
    tpu.vector_store %arg10[%c0_23, %c0_24], %34 {strides = array<i32>} : memref<16x128xf32, #tpu.memory_space<vmem>>, vector<16x128xf32>,
    return
  }
  func.func @transform_0(%arg0: i32) -> (i32, i32) {
    %c0_i32 = arith.constant 0 : i32
    %c0_i32_0 = arith.constant 0 : i32
    return %arg0, %c0_i32 : i32, i32
  }
  func.func @transform_1(%arg0: i32) -> (i32, i32) {
    %c0_i32 = arith.constant 0 : i32
    %c0_i32_0 = arith.constant 0 : i32
    %c0_i32_1 = arith.constant 0 : i32
    return %c0_i32, %c0_i32_0 : i32, i32
  }
  func.func @transform_2(%arg0: i32) -> (i32, i32) {
    %c0_i32 = arith.constant 0 : i32
    %c0_i32_0 = arith.constant 0 : i32
    %c0_i32_1 = arith.constant 0 : i32
    return %c0_i32, %c0_i32_0 : i32, i32
  }
  func.func @transform_3(%arg0: i32) -> (i32, i32) {
    %c0_i32 = arith.constant 0 : i32
    %c0_i32_0 = arith.constant 0 : i32
    %c0_i32_1 = arith.constant 0 : i32
    return %c0_i32, %c0_i32_0 : i32, i32
  }
  func.func @transform_4(%arg0: i32) -> (i32, i32) {
    %c0_i32 = arith.constant 0 : i32
    %c0_i32_0 = arith.constant 0 : i32
    %c0_i32_1 = arith.constant 0 : i32
    return %c0_i32, %c0_i32_0 : i32, i32
  }
  func.func @transform_5(%arg0: i32) -> (i32, i32) {
    %c0_i32 = arith.constant 0 : i32
    %c0_i32_0 = arith.constant 0 : i32
    %c0_i32_1 = arith.constant 0 : i32
    return %c0_i32, %c0_i32_0 : i32, i32
  }
  func.func @transform_6(%arg0: i32) -> (i32, i32) {
    %c0_i32 = arith.constant 0 : i32
    %c0_i32_0 = arith.constant 0 : i32
    %c0_i32_1 = arith.constant 0 : i32
    return %c0_i32, %c0_i32_0 : i32, i32
  }
  func.func @transform_7(%arg0: i32) -> (i32, i32) {
    %c0_i32 = arith.constant 0 : i32
    %c0_i32_0 = arith.constant 0 : i32
    %c0_i32_1 = arith.constant 0 : i32
    return %c0_i32, %c0_i32_0 : i32, i32
  }
  func.func @transform_8(%arg0: i32) -> (i32, i32) {
    %c0_i32 = arith.constant 0 : i32
    %c0_i32_0 = arith.constant 0 : i32
    %c0_i32_1 = arith.constant 0 : i32
    return %c0_i32, %c0_i32_0 : i32, i32
  }
  func.func @transform_9(%arg0: i32) -> (i32, i32) {
    %c0_i32 = arith.constant 0 : i32
    %c0_i32_0 = arith.constant 0 : i32
    return %arg0, %c0_i32 : i32, i32
  }
}

</mosaic_0001>

<llo_original>
// kernel: tpu_custom_call.1
$region0: #{tpu_custom_call.1}
  #allocation0 [shape = 'u32[]', space=smem, size = 0x4, offset = 0x4, fixed_abs, tag = 'smem constant byte address 0x4 - core index']
  #allocation1 [shape = 'u32[144,128]{1,0:T(1,128)}', space=vmem, size = 0x12000, scoped, tag = 'internal scratch']
  %s0 = inlined_call_operand.hbm [shape: f32[24,32], index: 0, kind: input, shape index: {}]
  %s1 = inlined_call_operand.hbm [shape: f32[32,768], index: 1, kind: input, shape index: {}]
  %s2 = inlined_call_operand.vmem [shape: f32[1,768], index: 2, kind: input, shape index: {}]
  %s3 = inlined_call_operand.hbm [shape: f32[768,256], index: 3, kind: input, shape index: {}]
  %s4 = inlined_call_operand.vmem [shape: f32[1,256], index: 4, kind: input, shape index: {}]
  %s5 = inlined_call_operand.hbm [shape: f32[256,128], index: 5, kind: input, shape index: {}]
  %s6 = inlined_call_operand.vmem [shape: f32[1,128], index: 6, kind: input, shape index: {}]
  %s7 = inlined_call_operand.hbm [shape: f32[128,128], index: 7, kind: input, shape index: {}]
  %s8 = inlined_call_operand.vmem [shape: f32[1,128], index: 8, kind: input, shape index: {}]
  %s9 = inlined_call_operand.hbm [shape: f32[24,128], index: 9, kind: output, shape index: {}]
  %s10 = sld [smem:[#allocation0]]
  $region89: #{tpu_custom_call.1} parent=0
    _
  %s12 = ssub.s32 1, %s10
  %s13 = scalar_select 0, %s12, %s10
  $region1: #{tpu_custom_call.1} parent=0
    #allocation2 [shape = 'u8[16384]{0}', space=vmem, size = 0x4000, scoped, tag = 'input window, operand 0']
    #allocation3 [shape = 's32[2]{0}', space=sflag, size = 0x8, scoped, tag = 'scoped memory for tpu_custom_call.1']
    #allocation4 [shape = 's32[2]{0}', space=sflag, size = 0x8, scoped, tag = 'scoped memory for tpu_custom_call.1']
    #allocation5 [shape = 'u8[98304]{0}', space=vmem, size = 0x18000, scoped, tag = 'input window, operand 1, single buffered']
    #allocation6 [shape = 's32[1]{0}', space=sflag, size = 0x4, scoped, tag = 'scoped memory for tpu_custom_call.1']
    #allocation7 [shape = 'u8[786432]{0}', space=vmem, size = 0xc0000, scoped, tag = 'input window, operand 3, single buffered']
    #allocation8 [shape = 'u8[131072]{0}', space=vmem, size = 0x20000, scoped, tag = 'input window, operand 5, single buffered']
    #allocation9 [shape = 's32[1]{0}', space=sflag, size = 0x4, scoped, tag = 'scoped memory for tpu_custom_call.1']
    #allocation10 [shape = 'u8[65536]{0}', space=vmem, size = 0x10000, scoped, tag = 'input window, operand 7, single buffered']
    #allocation11 [shape = 'u8[16384]{0}', space=vmem, size = 0x4000, scoped, tag = 'output window, operand 0']
    %14 = vsyncpa [#allocation3], 0
    %s15 = scalar_lea.sflag [#allocation3], 1
    %16 = vsyncpa %s15, 0
    %17 = vsyncpa [#allocation6], 0
    %18 = vsyncpa [#allocation9], 0
    %19 = vsyncpa [#allocation4], 0
    %s20 = scalar_lea.sflag [#allocation4], 1
    %21 = vsyncpa %s20, 0
    loop: start=0, step=1, limit=4
    $region2: #{tpu_custom_call.1} parent=1 // loop_pre_header
      _
    $region3: #{tpu_custom_call.1} parent=1 // loop_header
      %s23 = sphi 0, %s27
      %p24 = scmp.ge.s32.totalorder %s23, 4
      %s33 = sphi 0, %s35
      %s36 = sphi 0, %s33
      %s37 = sphi 0, %s36
      %s53 = sphi 0, %s37
      %s57 = sphi 0, %s57
      %s59 = sphi 0, %s57
      %s60 = sphi 0, %s59
      %s74 = sphi 0, %s60
      %s78 = sphi 0, %s78
      %s80 = sphi 0, %s78
      %s81 = sphi 0, %s80
      %s95 = sphi 0, %s81
      %s99 = sphi 0, %s99
      %s101 = sphi 0, %s99
      %s102 = sphi 0, %s101
      %s116 = sphi 0, %s102
      %s120 = sphi 0, %s120
      %s122 = sphi 0, %s120
      %s123 = sphi 0, %s122
      %s137 = sphi 0, %s123
      %s141 = sphi 0, %s141
      %s143 = sphi 0, %s141
      %s144 = sphi 0, %s143
      %s158 = sphi 0, %s144
      %s162 = sphi 0, %s162
      %s164 = sphi 0, %s162
      %s165 = sphi 0, %s164
      %s179 = sphi 0, %s165
      %s183 = sphi 0, %s183
      %s185 = sphi 0, %s183
      %s186 = sphi 0, %s185
      %s200 = sphi 0, %s186
      %s204 = sphi 0, %s204
      %s206 = sphi 0, %s204
      %s207 = sphi 0, %s206
      %s221 = sphi 0, %s207
      %s227 = sphi 0, %s229
      %s230 = sphi 0, %s227
      %s231 = sphi 0, %s230
      %s247 = sphi 0, %s231
    $region4: #{tpu_custom_call.1} parent=1 // loop_header_branch
      %26 = sbr.rel (%p24) target = $region8
    $region5: #{tpu_custom_call.1} parent=1 // loop_body
      %s28 = ssub.s32 %s23, 1
      %s29 = ssub.s32 %s23, 2
      %s30 = sadd.s32 %s23, 1
      %s31 = ssub.s32 %s23, %s30
      %p32 = scmp.eq.s32.totalorder %s31, 0
      %s34 = sadd.s32 %s33, 1
      %s35 = scalar_select %p32, %s33, %s34
      %p38 = pneg %p32
      %p39 = scmp.eq.s32.totalorder %s23, 1
      %p40 = por %p38, %p39
      %p41 = scmp.ne.s32.totalorder %s33, %s36
      %p42 = scmp.eq.s32.totalorder %s23, 0
      %p43 = por %p41, %p42
      %p44 = scmp.ne.s32.totalorder %s33, %s36
      %p45 = scmp.eq.s32.totalorder %s28, 1
      %p46 = por %p44, %p45
      %p47 = scmp.ne.s32.totalorder %s36, %s37
      %p48 = scmp.eq.s32.totalorder %s28, 0
      %p49 = por %p47, %p48
      %p50 = scmp.ne.s32.totalorder %s36, %s37
      %p51 = scmp.eq.s32.totalorder %s29, 1
      %p52 = por %p50, %p51
      %p54 = scmp.ne.s32.totalorder %s37, %s53
      %p55 = scmp.eq.s32.totalorder %s29, 0
      %p56 = por %p54, %p55
      %s58 = sadd.s32 %s57, 1
      %p61 = scmp.eq.s32.totalorder %s23, 1
      %p62 = scmp.ne.s32.totalorder %s57, %s59
      %p63 = scmp.eq.s32.totalorder %s23, 0
      %p64 = por %p62, %p63
      %p65 = scmp.ne.s32.totalorder %s57, %s59
      %p66 = scmp.eq.s32.totalorder %s28, 1
      %p67 = por %p65, %p66
      %p68 = scmp.ne.s32.totalorder %s59, %s60
      %p69 = scmp.eq.s32.totalorder %s28, 0
      %p70 = por %p68, %p69
      %p71 = scmp.ne.s32.totalorder %s59, %s60
      %p72 = scmp.eq.s32.totalorder %s29, 1
      %p73 = por %p71, %p72
      %p75 = scmp.ne.s32.totalorder %s60, %s74
      %p76 = scmp.eq.s32.totalorder %s29, 0
      %p77 = por %p75, %p76
      %s79 = sadd.s32 %s78, 1
      %p82 = scmp.eq.s32.totalorder %s23, 1
      %p83 = scmp.ne.s32.totalorder %s78, %s80
      %p84 = scmp.eq.s32.totalorder %s23, 0
      %p85 = por %p83, %p84
      %p86 = scmp.ne.s32.totalorder %s78, %s80
      %p87 = scmp.eq.s32.totalorder %s28, 1
      %p88 = por %p86, %p87
      %p89 = scmp.ne.s32.totalorder %s80, %s81
      %p90 = scmp.eq.s32.totalorder %s28, 0
      %p91 = por %p89, %p90
      %p92 = scmp.ne.s32.totalorder %s80, %s81
      %p93 = scmp.eq.s32.totalorder %s29, 1
      %p94 = por %p92, %p93
      %p96 = scmp.ne.s32.totalorder %s81, %s95
      %p97 = scmp.eq.s32.totalorder %s29, 0
      %p98 = por %p96, %p97
      %s100 = sadd.s32 %s99, 1
      %p103 = scmp.eq.s32.totalorder %s23, 1
      %p104 = scmp.ne.s32.totalorder %s99, %s101
      %p105 = scmp.eq.s32.totalorder %s23, 0
      %p106 = por %p104, %p105
      %p107 = scmp.ne.s32.totalorder %s99, %s101
      %p108 = scmp.eq.s32.totalorder %s28, 1
      %p109 = por %p107, %p108
      %p110 = scmp.ne.s32.totalorder %s101, %s102
      %p111 = scmp.eq.s32.totalorder %s28, 0
      %p112 = por %p110, %p111
      %p113 = scmp.ne.s32.totalorder %s101, %s102
      %p114 = scmp.eq.s32.totalorder %s29, 1
      %p115 = por %p113, %p114
      %p117 = scmp.ne.s32.totalorder %s102, %s116
      %p118 = scmp.eq.s32.totalorder %s29, 0
      %p119 = por %p117, %p118
      %s121 = sadd.s32 %s120, 1
      %p124 = scmp.eq.s32.totalorder %s23, 1
      %p125 = scmp.ne.s32.totalorder %s120, %s122
      %p126 = scmp.eq.s32.totalorder %s23, 0
      %p127 = por %p125, %p126
      %p128 = scmp.ne.s32.totalorder %s120, %s122
      %p129 = scmp.eq.s32.totalorder %s28, 1
      %p130 = por %p128, %p129
      %p131 = scmp.ne.s32.totalorder %s122, %s123
      %p132 = scmp.eq.s32.totalorder %s28, 0
      %p133 = por %p131, %p132
      %p134 = scmp.ne.s32.totalorder %s122, %s123
      %p135 = scmp.eq.s32.totalorder %s29, 1
      %p136 = por %p134, %p135
      %p138 = scmp.ne.s32.totalorder %s123, %s137
      %p139 = scmp.eq.s32.totalorder %s29, 0
      %p140 = por %p138, %p139
      %s142 = sadd.s32 %s141, 1
      %p145 = scmp.eq.s32.totalorder %s23, 1
      %p146 = scmp.ne.s32.totalorder %s141, %s143
      %p147 = scmp.eq.s32.totalorder %s23, 0
      %p148 = por %p146, %p147
      %p149 = scmp.ne.s32.totalorder %s141, %s143
      %p150 = scmp.eq.s32.totalorder %s28, 1
      %p151 = por %p149, %p150
      %p152 = scmp.ne.s32.totalorder %s143, %s144
      %p153 = scmp.eq.s32.totalorder %s28, 0
      %p154 = por %p152, %p153
      %p155 = scmp.ne.s32.totalorder %s143, %s144
      %p156 = scmp.eq.s32.totalorder %s29, 1
      %p157 = por %p155, %p156
      %p159 = scmp.ne.s32.totalorder %s144, %s158
      %p160 = scmp.eq.s32.totalorder %s29, 0
      %p161 = por %p159, %p160
      %s163 = sadd.s32 %s162, 1
      %p166 = scmp.eq.s32.totalorder %s23, 1
      %p167 = scmp.ne.s32.totalorder %s162, %s164
      %p168 = scmp.eq.s32.totalorder %s23, 0
      %p169 = por %p167, %p168
      %p170 = scmp.ne.s32.totalorder %s162, %s164
      %p171 = scmp.eq.s32.totalorder %s28, 1
      %p172 = por %p170, %p171
      %p173 = scmp.ne.s32.totalorder %s164, %s165
      %p174 = scmp.eq.s32.totalorder %s28, 0
      %p175 = por %p173, %p174
      %p176 = scmp.ne.s32.totalorder %s164, %s165
      %p177 = scmp.eq.s32.totalorder %s29, 1
      %p178 = por %p176, %p177
      %p180 = scmp.ne.s32.totalorder %s165, %s179
      %p181 = scmp.eq.s32.totalorder %s29, 0
      %p182 = por %p180, %p181
      %s184 = sadd.s32 %s183, 1
      %p187 = scmp.eq.s32.totalorder %s23, 1
      %p188 = scmp.ne.s32.totalorder %s183, %s185
      %p189 = scmp.eq.s32.totalorder %s23, 0
      %p190 = por %p188, %p189
      %p191 = scmp.ne.s32.totalorder %s183, %s185
      %p192 = scmp.eq.s32.totalorder %s28, 1
      %p193 = por %p191, %p192
      %p194 = scmp.ne.s32.totalorder %s185, %s186
      %p195 = scmp.eq.s32.totalorder %s28, 0
      %p196 = por %p194, %p195
      %p197 = scmp.ne.s32.totalorder %s185, %s186
      %p198 = scmp.eq.s32.totalorder %s29, 1
      %p199 = por %p197, %p198
      %p201 = scmp.ne.s32.totalorder %s186, %s200
      %p202 = scmp.eq.s32.totalorder %s29, 0
      %p203 = por %p201, %p202
      %s205 = sadd.s32 %s204, 1
      %p208 = scmp.eq.s32.totalorder %s23, 1
      %p209 = scmp.ne.s32.totalorder %s204, %s206
      %p210 = scmp.eq.s32.totalorder %s23, 0
      %p211 = por %p209, %p210
      %p212 = scmp.ne.s32.totalorder %s204, %s206
      %p213 = scmp.eq.s32.totalorder %s28, 1
      %p214 = por %p212, %p213
      %p215 = scmp.ne.s32.totalorder %s206, %s207
      %p216 = scmp.eq.s32.totalorder %s28, 0
      %p217 = por %p215, %p216
      %p218 = scmp.ne.s32.totalorder %s206, %s207
      %p219 = scmp.eq.s32.totalorder %s29, 1
      %p220 = por %p218, %p219
      %p222 = scmp.ne.s32.totalorder %s207, %s221
      %p223 = scmp.eq.s32.totalorder %s29, 0
      %p224 = por %p222, %p223
      %s225 = ssub.s32 %s23, %s30
      %p226 = scmp.eq.s32.totalorder %s225, 0
      %s228 = sadd.s32 %s227, 1
      %s229 = scalar_select %p226, %s227, %s228
      %p232 = pneg %p226
      %p233 = scmp.eq.s32.totalorder %s23, 1
      %p234 = por %p232, %p233
      %p235 = scmp.ne.s32.totalorder %s227, %s230
      %p236 = scmp.eq.s32.totalorder %s23, 0
      %p237 = por %p235, %p236
      %p238 = scmp.ne.s32.totalorder %s227, %s230
      %p239 = scmp.eq.s32.totalorder %s28, 1
      %p240 = por %p238, %p239
      %p241 = scmp.ne.s32.totalorder %s230, %s231
      %p242 = scmp.eq.s32.totalorder %s28, 0
      %p243 = por %p241, %p242
      %p244 = scmp.ne.s32.totalorder %s230, %s231
      %p245 = scmp.eq.s32.totalorder %s29, 1
      %p246 = por %p244, %p245
      %p248 = scmp.ne.s32.totalorder %s231, %s247
      %p249 = scmp.eq.s32.totalorder %s29, 0
      %p250 = por %p248, %p249
      %p251 = scmp.le.s32.totalorder 1, %s23
      %p252 = scmp.lt.s32.totalorder %s23, 3
      %p253 = pnand %p251, %p252
      %p254 = pneg %p253
      // Predicated region
      $region9: #{tpu_custom_call.1} parent=5 // pred_check
        _
      $region10: #{tpu_custom_call.1} parent=5 // pred_check_branch
        %256 = sbr.rel (%p253) target = $region12
      $region11: #{tpu_custom_call.1} parent=5 // pred_region
        %s257 = ssub.s32 %s23, 1
        // Predicated region
        $region13: #{tpu_custom_call.1} parent=11 // pred_check
          %p258 = pneg %p70
        $region14: #{tpu_custom_call.1} parent=11 // pred_check_branch
          %260 = sbr.rel (%p258) target = $region16
        $region15: #{tpu_custom_call.1} parent=11 // pred_region
          %s262 = ssub.s32 3072, 3072
          %263 = vsyncadd [#allocation6], %s262
          %s264 = sshll.u32 [#allocation5], 4
          %s265 = int_to_ptr.vmem [resolvable:$true] %s264
          %270 = dma.hbm_to_vmem [thread:$0]  %s1, 3072, %s265, [#allocation6], 768, 768, 48
        $region16: #{tpu_custom_call.1} parent=11 // pred_fallthru
          _
        // Predicated region
        $region17: #{tpu_custom_call.1} parent=11 // pred_check
          %p271 = pneg %p91
        $region18: #{tpu_custom_call.1} parent=11 // pred_check_branch
          %273 = sbr.rel (%p271) target = $region20
        $region19: #{tpu_custom_call.1} parent=11 // pred_region
          _
        $region20: #{tpu_custom_call.1} parent=11 // pred_fallthru
          _
        // Predicated region
        $region21: #{tpu_custom_call.1} parent=11 // pred_check
          %p274 = pneg %p112
        $region22: #{tpu_custom_call.1} parent=11 // pred_check_branch
          %276 = sbr.rel (%p274) target = $region24
        $region23: #{tpu_custom_call.1} parent=11 // pred_region
          %s278 = ssub.s32 24576, 24576
          %279 = vsyncadd [#allocation6], %s278
          %s280 = sshll.u32 [#allocation7], 4
          %s281 = int_to_ptr.vmem [resolvable:$true] %s280
          %286 = dma.hbm_to_vmem [thread:$0]  %s3, 24576, %s281, [#allocation6], 256, 256, 16
        $region24: #{tpu_custom_call.1} parent=11 // pred_fallthru
          _
        // Predicated region
        $region25: #{tpu_custom_call.1} parent=11 // pred_check
          %p287 = pneg %p133
        $region26: #{tpu_custom_call.1} parent=11 // pred_check_branch
          %289 = sbr.rel (%p287) target = $region28
        $region27: #{tpu_custom_call.1} parent=11 // pred_region
          _
        $region28: #{tpu_custom_call.1} parent=11 // pred_fallthru
          _
        // Predicated region
        $region29: #{tpu_custom_call.1} parent=11 // pred_check
          %p290 = pneg %p154
        $region30: #{tpu_custom_call.1} parent=11 // pred_check_branch
          %292 = sbr.rel (%p290) target = $region32
        $region31: #{tpu_custom_call.1} parent=11 // pred_region
          %s294 = ssub.s32 4096, 4096
          %295 = vsyncadd [#allocation9], %s294
          %s296 = sshll.u32 [#allocation8], 4
          %s297 = int_to_ptr.vmem [resolvable:$true] %s296
          %302 = dma.hbm_to_vmem [thread:$0]  %s5, 4096, %s297, [#allocation9], 128, 128, 8
        $region32: #{tpu_custom_call.1} parent=11 // pred_fallthru
          _
        // Predicated region
        $region33: #{tpu_custom_call.1} parent=11 // pred_check
          %p303 = pneg %p175
        $region34: #{tpu_custom_call.1} parent=11 // pred_check_branch
          %305 = sbr.rel (%p303) target = $region36
        $region35: #{tpu_custom_call.1} parent=11 // pred_region
          _
        $region36: #{tpu_custom_call.1} parent=11 // pred_fallthru
          _
        // Predicated region
        $region37: #{tpu_custom_call.1} parent=11 // pred_check
          %p306 = pneg %p196
        $region38: #{tpu_custom_call.1} parent=11 // pred_check_branch
          %308 = sbr.rel (%p306) target = $region40
        $region39: #{tpu_custom_call.1} parent=11 // pred_region
          %s310 = ssub.s32 2048, 2048
          %311 = vsyncadd [#allocation9], %s310
          %s312 = sshll.u32 [#allocation10], 4
          %s313 = int_to_ptr.vmem [resolvable:$true] %s312
          %318 = dma.hbm_to_vmem [thread:$0]  %s7, 2048, %s313, [#allocation9], 128, 128, 8
        $region40: #{tpu_custom_call.1} parent=11 // pred_fallthru
          _
        // Predicated region
        $region41: #{tpu_custom_call.1} parent=11 // pred_check
          %p319 = pneg %p217
        $region42: #{tpu_custom_call.1} parent=11 // pred_check_branch
          %321 = sbr.rel (%p319) target = $region44
        $region43: #{tpu_custom_call.1} parent=11 // pred_region
          _
        $region44: #{tpu_custom_call.1} parent=11 // pred_fallthru
          _
      $region12: #{tpu_custom_call.1} parent=5 // pred_fallthru
        _
      %p322 = scmp.lt.s32.totalorder %s23, 2
      // Predicated region
      $region45: #{tpu_custom_call.1} parent=5 // pred_check
        %p323 = pneg %p322
      $region46: #{tpu_custom_call.1} parent=5 // pred_check_branch
        %325 = sbr.rel (%p323) target = $region48
      $region47: #{tpu_custom_call.1} parent=5 // pred_region
        // Predicated region
        $region49: #{tpu_custom_call.1} parent=47 // pred_check
          %p326 = pneg %p43
        $region50: #{tpu_custom_call.1} parent=47 // pred_check_branch
          %328 = sbr.rel (%p326) target = $region52
        $region51: #{tpu_custom_call.1} parent=47 // pred_region
          %s329 = sand.u32 %s33, 1
          %s330 = scalar_lea.sflag [#allocation3], %s329
          %s331 = sand.u32 %s33, 1
          %s332 = smul.addr %s331, 16
          %s333 = scalar_lea.vmem [#allocation2], %s332
          %s334 = smul.u32 2, %s23
          %s335 = ssub.s32 3, %s334
          %p336 = scmp.lt.s32.totalorder %s335, 2
          %s337 = scalar_select %p336, %s335, 2
          %s338 = smul.u32 128, %s337
          %s340 = ssub.s32 256, %s338
          %341 = vsyncadd %s330, %s340
          %p342 = scmp.ne.s32.totalorder 0, %s338
          %s343 = smul.addr %s334, 128
          %s344 = scalar_lea.hbm %s0, %s343
          %s345 = smul.u32 8, %s337
          %s346 = sshll.u32 %s333, 4
          %s347 = int_to_ptr.vmem [resolvable:$true] %s346
          %s348 = sshll.u32 %s345, 4
          %352 = dma.hbm_to_vmem [thread:$0]  (%p342), %s344, %s348, %s347, %s330, 128, 128, 8
        $region52: #{tpu_custom_call.1} parent=47 // pred_fallthru
          _
      $region48: #{tpu_custom_call.1} parent=5 // pred_fallthru
        _
      %p353 = scmp.le.s32.totalorder 1, %s23
      %p354 = scmp.lt.s32.totalorder %s23, 3
      %p355 = pnand %p353, %p354
      %p356 = pneg %p355
      // Predicated region
      $region53: #{tpu_custom_call.1} parent=5 // pred_check
        _
      $region54: #{tpu_custom_call.1} parent=5 // pred_check_branch
        %358 = sbr.rel (%p355) target = $region56
      $region55: #{tpu_custom_call.1} parent=5 // pred_region
        %s359 = ssub.s32 %s23, 1
        %s360 = sand.u32 %s36, 1
        %s361 = scalar_lea.sflag [#allocation3], %s360
        %s362 = sand.u32 %s36, 1
        %s363 = smul.addr %s362, 16
        %s364 = scalar_lea.vmem [#allocation2], %s363
        // Predicated region
        $region57: #{tpu_custom_call.1} parent=55 // pred_check
          %p365 = pneg %p49
        $region58: #{tpu_custom_call.1} parent=55 // pred_check_branch
          %367 = sbr.rel (%p365) target = $region60
        $region59: #{tpu_custom_call.1} parent=55 // pred_region
          %368 = dma.done %s361, 256
        $region60: #{tpu_custom_call.1} parent=55 // pred_fallthru
          _
        // Predicated region
        $region61: #{tpu_custom_call.1} parent=55 // pred_check
          %p369 = pneg %p70
        $region62: #{tpu_custom_call.1} parent=55 // pred_check_branch
          %371 = sbr.rel (%p369) target = $region64
        $region63: #{tpu_custom_call.1} parent=55 // pred_region
          %372 = dma.done [#allocation6], 3072
        $region64: #{tpu_custom_call.1} parent=55 // pred_fallthru
          _
        // Predicated region
        $region65: #{tpu_custom_call.1} parent=55 // pred_check
          %p373 = pneg %p112
        $region66: #{tpu_custom_call.1} parent=55 // pred_check_branch
          %375 = sbr.rel (%p373) target = $region68
        $region67: #{tpu_custom_call.1} parent=55 // pred_region
          %376 = dma.done [#allocation6], 24576
        $region68: #{tpu_custom_call.1} parent=55 // pred_fallthru
          _
        // Predicated region
        $region69: #{tpu_custom_call.1} parent=55 // pred_check
          %p377 = pneg %p154
        $region70: #{tpu_custom_call.1} parent=55 // pred_check_branch
          %379 = sbr.rel (%p377) target = $region72
        $region71: #{tpu_custom_call.1} parent=55 // pred_region
          %380 = dma.done [#allocation9], 4096
        $region72: #{tpu_custom_call.1} parent=55 // pred_fallthru
          _
        // Predicated region
        $region73: #{tpu_custom_call.1} parent=55 // pred_check
          %p381 = pneg %p196
        $region74: #{tpu_custom_call.1} parent=55 // pred_check_branch
          %383 = sbr.rel (%p381) target = $region76
        $region75: #{tpu_custom_call.1} parent=55 // pred_region
          %384 = dma.done [#allocation9], 2048
        $region76: #{tpu_custom_call.1} parent=55 // pred_fallthru
          _
        %s385 = sand.u32 %s36, 1
        %s386 = scalar_lea.sflag [#allocation3], %s385
        %s387 = sand.u32 %s36, 1
        %s388 = smul.addr %s387, 16
        %s389 = scalar_lea.vmem [#allocation2], %s388
        %p390 = pneg %p49
        %p391 = pneg %p46
        %p392 = pneg %p70
        %p393 = pneg %p67
        %p394 = pneg %p91
        %p395 = pneg %p88
        %p396 = pneg %p112
        %p397 = pneg %p109
        %p398 = pneg %p133
        %p399 = pneg %p130
        %p400 = pneg %p154
        %p401 = pneg %p151
        %p402 = pneg %p175
        %p403 = pneg %p172
        %p404 = pneg %p196
        %p405 = pneg %p193
        %p406 = pneg %p217
        %p407 = pneg %p214
        %p408 = pneg %p243
        %p409 = pneg %p240
        %s410 = sand.u32 %s230, 1
        %s411 = scalar_lea.sflag [#allocation4], %s410
        %s412 = sand.u32 %s230, 1
        %s413 = smul.addr %s412, 16
        %s414 = scalar_lea.vmem [#allocation11], %s413
        %s415 = smul.u32 2, %s28
        %s416 = ssub.s32 3, %s415
        %p417 = scmp.lt.s32.totalorder %s416, 2
        %s418 = scalar_select %p417, %s416, 2
        %s419 = smul.u32 128, %s418
        %s420 = smul.u32 2, %s28
        %s421 = ssub.s32 3, %s420
        %p422 = scmp.lt.s32.totalorder %s421, 2
        %s423 = scalar_select %p422, %s421, 2
        %s424 = smul.u32 128, %s423
        %v426 = vld [vmem:[%s364] sm:$0xff]
        %v427 = vld [vmem:[%s364 + $0x8] sm:$0xff]
        %v428 = vpack.c.bf16 %v427, %v426
        %v429 = vld [vmem:[#allocation5] sm:$0xff]
        %v430 = vld [vmem:[#allocation5 + $0x8] sm:$0xff]
        %v431 = vld [vmem:[#allocation5 + $0x10] sm:$0xff]
        %v432 = vld [vmem:[#allocation5 + $0x18] sm:$0xff]
        %v433 = vld [vmem:[#allocation5 + $0x20] sm:$0xff]
        %v434 = vld [vmem:[#allocation5 + $0x28] sm:$0xff]
        %v435 = vld [vmem:[#allocation5 + $0x30] sm:$0xff]
        %v436 = vld [vmem:[#allocation5 + $0x38] sm:$0xff]
        %v437 = vld [vmem:[#allocation5 + $0x40] sm:$0xff]
        %v438 = vld [vmem:[#allocation5 + $0x48] sm:$0xff]
        %v439 = vld [vmem:[#allocation5 + $0x50] sm:$0xff]
        %v440 = vld [vmem:[#allocation5 + $0x58] sm:$0xff]
        %v441 = vld [vmem:[#allocation5 + $0x60] sm:$0xff]
        %v442 = vld [vmem:[#allocation5 + $0x68] sm:$0xff]
        %v443 = vld [vmem:[#allocation5 + $0x70] sm:$0xff]
        %v444 = vld [vmem:[#allocation5 + $0x78] sm:$0xff]
        %v445 = vld [vmem:[#allocation5 + $0x80] sm:$0xff]
        %v446 = vld [vmem:[#allocation5 + $0x88] sm:$0xff]
        %v447 = vld [vmem:[#allocation5 + $0x90] sm:$0xff]
        %v448 = vld [vmem:[#allocation5 + $0x98] sm:$0xff]
        %v449 = vld [vmem:[#allocation5 + $0xa0] sm:$0xff]
        %v450 = vld [vmem:[#allocation5 + $0xa8] sm:$0xff]
        %v451 = vld [vmem:[#allocation5 + $0xb0] sm:$0xff]
        %v452 = vld [vmem:[#allocation5 + $0xb8] sm:$0xff]
        %v453 = vpack.c.bf16 %v435, %v429
        %v454 = vpack.c.bf16 %v436, %v430
        %v455 = vpack.c.bf16 %v437, %v431
        %v456 = vpack.c.bf16 %v438, %v432
        %v457 = vpack.c.bf16 %v439, %v433
        %v458 = vpack.c.bf16 %v440, %v434
        %v459 = vpack.c.bf16 %v447, %v441
        %v460 = vpack.c.bf16 %v448, %v442
        %v461 = vpack.c.bf16 %v449, %v443
        %v462 = vpack.c.bf16 %v450, %v444
        %v463 = vpack.c.bf16 %v451, %v445
        %v464 = vpack.c.bf16 %v452, %v446
        %v465 = vld [vmem:[%s2] sm:$0x3f]
        %v467 = vlaneseq
        %v468 = vshrl.u32 %v467, 7
        %v469 = vsub.s32 0, %v468
        %v470 = vrot.slane %v465, %v469
        %v471 = vlaneseq
        %v472 = vshrl.u32 %v471, 7
        %v473 = vsub.s32 1, %v472
        %v474 = vrot.slane %v465, %v473
        %v475 = vlaneseq
        %v476 = vshrl.u32 %v475, 7
        %v477 = vsub.s32 2, %v476
        %v478 = vrot.slane %v465, %v477
        %v479 = vlaneseq
        %v480 = vshrl.u32 %v479, 7
        %v481 = vsub.s32 3, %v480
        %v482 = vrot.slane %v465, %v481
        %v483 = vlaneseq
        %v484 = vshrl.u32 %v483, 7
        %v485 = vsub.s32 4, %v484
        %v486 = vrot.slane %v465, %v485
        %v487 = vlaneseq
        %v488 = vshrl.u32 %v487, 7
        %v489 = vsub.s32 5, %v488
        %v490 = vrot.slane %v465, %v489
        %vm497 = vcmask 261120
        %v499 = vsel %vm497, %v428, 0
        %501 = vmatprep.subr.bf16.mxu0 %v454
        %502 = vmatpush1.bf16.msra.mxu0 %v453
        %503 = vmatprep.subr.bf16.mxu0 %v460
        %504 = vmatpush1.bf16.msra.mxu0 %v459
        %505 = vmatprep.subr.bf16.mxu0 0
        %506 = vmatpush1.bf16.msra.mxu0 0
        %507 = vmatprep.subr.bf16.mxu0 0
        %508 = vmatpush1.bf16.msra.mxu0 0
        %509 = vmatprep.subr.bf16.mxu0 0
        %510 = vmatpush1.bf16.msra.mxu0 0
        %511 = vmatprep.subr.bf16.mxu0 0
        %512 = vmatpush1.bf16.msra.mxu0 0
        %513 = vmatprep.subr.bf16.mxu0 0
        %514 = vmatpush1.bf16.msra.mxu0 0
        %515 = vmatprep.subr.bf16.mxu0 0
        %516 = vmatpush1.bf16.msra.mxu0 0
        %517 = vmatprep.subr.bf16.mxu0 0
        %518 = vmatpush1.bf16.msra.mxu0 0
        %519 = vmatprep.subr.bf16.mxu0 0
        %520 = vmatpush1.bf16.msra.mxu0 0
        %521 = vmatprep.subr.bf16.mxu0 0
        %522 = vmatpush1.bf16.msra.mxu0 0
        %523 = vmatprep.subr.bf16.mxu0 0
        %524 = vmatpush1.bf16.msra.mxu0 0
        %525 = vmatprep.subr.bf16.mxu0 0
        %526 = vmatpush1.bf16.msra.mxu0 0
        %527 = vmatprep.subr.bf16.mxu0 0
        %528 = vmatpush1.bf16.msra.mxu0 0
        %529 = vmatprep.subr.bf16.mxu0 0
        %530 = vmatpush1.bf16.msra.mxu0 0
        %531 = vmatprep.subr.bf16.mxu0 0
        %532 = vmatpush1.bf16.msra.mxu0 0
        %533 = vmatprep.mubr.bf16.mxu0 0
        %534 = vmatmul.mubr.bf16.gmra.mrb[0].mxu0 %v499
        %v535 = vpop.f32.mrb[0].mxu0
        %v536 = vadd.f32 %v470, %v535
        %v537 = vpop.f32.mrb[0].mxu0
        %v538 = vadd.f32 %v474, %v537
        %v539 = vpop.f32.mrb[0].mxu0
        %v540 = vadd.f32 %v470, %v539
        %v541 = vpop.f32.mrb[0].mxu0
        %v542 = vadd.f32 %v474, %v541
        %543 = vdwg.mxu0
        %544 = vmatprep.subr.bf16.mxu0 %v456
        %545 = vmatpush1.bf16.msra.mxu0 %v455
        %546 = vmatprep.subr.bf16.mxu0 %v462
        %547 = vmatpush1.bf16.msra.mxu0 %v461
        %548 = vmatprep.subr.bf16.mxu0 0
        %549 = vmatpush1.bf16.msra.mxu0 0
        %550 = vmatprep.subr.bf16.mxu0 0
        %551 = vmatpush1.bf16.msra.mxu0 0
        %552 = vmatprep.subr.bf16.mxu0 0
        %553 = vmatpush1.bf16.msra.mxu0 0
        %554 = vmatprep.subr.bf16.mxu0 0
        %555 = vmatpush1.bf16.msra.mxu0 0
        %556 = vmatprep.subr.bf16.mxu0 0
        %557 = vmatpush1.bf16.msra.mxu0 0
        %558 = vmatprep.subr.bf16.mxu0 0
        %559 = vmatpush1.bf16.msra.mxu0 0
        %560 = vmatprep.subr.bf16.mxu0 0
        %561 = vmatpush1.bf16.msra.mxu0 0
        %562 = vmatprep.subr.bf16.mxu0 0
        %563 = vmatpush1.bf16.msra.mxu0 0
        %564 = vmatprep.subr.bf16.mxu0 0
        %565 = vmatpush1.bf16.msra.mxu0 0
        %566 = vmatprep.subr.bf16.mxu0 0
        %567 = vmatpush1.bf16.msra.mxu0 0
        %568 = vmatprep.subr.bf16.mxu0 0
        %569 = vmatpush1.bf16.msra.mxu0 0
        %570 = vmatprep.subr.bf16.mxu0 0
        %571 = vmatpush1.bf16.msra.mxu0 0
        %572 = vmatprep.subr.bf16.mxu0 0
        %573 = vmatpush1.bf16.msra.mxu0 0
        %574 = vmatprep.subr.bf16.mxu0 0
        %575 = vmatpush1.bf16.msra.mxu0 0
        %576 = vmatprep.mubr.bf16.mxu0 0
        %577 = vmatmul.mubr.bf16.gmra.mrb[0].mxu0 %v499
        %v578 = vpop.f32.mrb[0].mxu0
        %v579 = vadd.f32 %v478, %v578
        %v580 = vpop.f32.mrb[0].mxu0
        %v581 = vadd.f32 %v482, %v580
        %v582 = vpop.f32.mrb[0].mxu0
        %v583 = vadd.f32 %v478, %v582
        %v584 = vpop.f32.mrb[0].mxu0
        %v585 = vadd.f32 %v482, %v584
        %586 = vdwg.mxu0
        %587 = vmatprep.subr.bf16.mxu0 %v458
        %588 = vmatpush1.bf16.msra.mxu0 %v457
        %589 = vmatprep.subr.bf16.mxu0 %v464
        %590 = vmatpush1.bf16.msra.mxu0 %v463
        %591 = vmatprep.subr.bf16.mxu0 0
        %592 = vmatpush1.bf16.msra.mxu0 0
        %593 = vmatprep.subr.bf16.mxu0 0
        %594 = vmatpush1.bf16.msra.mxu0 0
        %595 = vmatprep.subr.bf16.mxu0 0
        %596 = vmatpush1.bf16.msra.mxu0 0
        %597 = vmatprep.subr.bf16.mxu0 0
        %598 = vmatpush1.bf16.msra.mxu0 0
        %599 = vmatprep.subr.bf16.mxu0 0
        %600 = vmatpush1.bf16.msra.mxu0 0
        %601 = vmatprep.subr.bf16.mxu0 0
        %602 = vmatpush1.bf16.msra.mxu0 0
        %603 = vmatprep.subr.bf16.mxu0 0
        %604 = vmatpush1.bf16.msra.mxu0 0
        %605 = vmatprep.subr.bf16.mxu0 0
        %606 = vmatpush1.bf16.msra.mxu0 0
        %607 = vmatprep.subr.bf16.mxu0 0
        %608 = vmatpush1.bf16.msra.mxu0 0
        %609 = vmatprep.subr.bf16.mxu0 0
        %610 = vmatpush1.bf16.msra.mxu0 0
        %611 = vmatprep.subr.bf16.mxu0 0
        %612 = vmatpush1.bf16.msra.mxu0 0
        %613 = vmatprep.subr.bf16.mxu0 0
        %614 = vmatpush1.bf16.msra.mxu0 0
        %615 = vmatprep.subr.bf16.mxu0 0
        %616 = vmatpush1.bf16.msra.mxu0 0
        %617 = vmatprep.subr.bf16.mxu0 0
        %618 = vmatpush1.bf16.msra.mxu0 0
        %619 = vmatprep.mubr.bf16.mxu0 0
        %620 = vmatmul.mubr.bf16.gmra.mrb[0].mxu0 %v499
        %v621 = vpop.f32.mrb[0].mxu0
        %v622 = vadd.f32 %v486, %v621
        %v623 = vpop.f32.mrb[0].mxu0
        %v624 = vadd.f32 %v490, %v623
        %v625 = vpop.f32.mrb[0].mxu0
        %v626 = vadd.f32 %v486, %v625
        %v627 = vpop.f32.mrb[0].mxu0
        %v628 = vadd.f32 %v490, %v627
        %629 = vdwg.mxu0
        %v630 = vmax.f32 %v536, 0.0
        %v631 = vmax.f32 %v538, 0.0
        %v632 = vmax.f32 %v579, 0.0
        %v633 = vmax.f32 %v581, 0.0
        %v634 = vmax.f32 %v622, 0.0
        %v635 = vmax.f32 %v624, 0.0
        %v636 = vmax.f32 %v540, 0.0
        %v637 = vmax.f32 %v542, 0.0
        %v638 = vmax.f32 %v583, 0.0
        %v639 = vmax.f32 %v585, 0.0
        %v640 = vmax.f32 %v626, 0.0
        %v641 = vmax.f32 %v628, 0.0
        %v642 = vpack.c.bf16 %v636, %v630
        %v643 = vpack.c.bf16 %v637, %v631
        %v644 = vpack.c.bf16 %v638, %v632
        %v645 = vpack.c.bf16 %v639, %v633
        %v646 = vpack.c.bf16 %v640, %v634
        %v647 = vpack.c.bf16 %v641, %v635
        %v648 = vld [vmem:[#allocation7] sm:$0xff]
        %v649 = vld [vmem:[#allocation7 + $0x8] sm:$0xff]
        %v650 = vld [vmem:[#allocation7 + $0x10] sm:$0xff]
        %v651 = vld [vmem:[#allocation7 + $0x18] sm:$0xff]
        %v652 = vld [vmem:[#allocation7 + $0x20] sm:$0xff]
        %v653 = vld [vmem:[#allocation7 + $0x28] sm:$0xff]
        %v654 = vld [vmem:[#allocation7 + $0x30] sm:$0xff]
        %v655 = vld [vmem:[#allocation7 + $0x38] sm:$0xff]
        %v656 = vld [vmem:[#allocation7 + $0x40] sm:$0xff]
        %v657 = vld [vmem:[#allocation7 + $0x48] sm:$0xff]
        %v658 = vld [vmem:[#allocation7 + $0x50] sm:$0xff]
        %v659 = vld [vmem:[#allocation7 + $0x58] sm:$0xff]
        %v660 = vld [vmem:[#allocation7 + $0x60] sm:$0xff]
        %v661 = vld [vmem:[#allocation7 + $0x68] sm:$0xff]
        %v662 = vld [vmem:[#allocation7 + $0x70] sm:$0xff]
        %v663 = vld [vmem:[#allocation7 + $0x78] sm:$0xff]
        %v664 = vld [vmem:[#allocation7 + $0x80] sm:$0xff]
        %v665 = vld [vmem:[#allocation7 + $0x88] sm:$0xff]
        %v666 = vld [vmem:[#allocation7 + $0x90] sm:$0xff]
        %v667 = vld [vmem:[#allocation7 + $0x98] sm:$0xff]
        %v668 = vld [vmem:[#allocation7 + $0xa0] sm:$0xff]
        %v669 = vld [vmem:[#allocation7 + $0xa8] sm:$0xff]
        %v670 = vld [vmem:[#allocation7 + $0xb0] sm:$0xff]
        %v671 = vld [vmem:[#allocation7 + $0xb8] sm:$0xff]
        %v672 = vld [vmem:[#allocation7 + $0xc0] sm:$0xff]
        %v673 = vld [vmem:[#allocation7 + $0xc8] sm:$0xff]
        %v674 = vld [vmem:[#allocation7 + $0xd0] sm:$0xff]
        %v675 = vld [vmem:[#allocation7 + $0xd8] sm:$0xff]
        %v676 = vld [vmem:[#allocation7 + $0xe0] sm:$0xff]
        %v677 = vld [vmem:[#allocation7 + $0xe8] sm:$0xff]
        %v678 = vld [vmem:[#allocation7 + $0xf0] sm:$0xff]
        %v679 = vld [vmem:[#allocation7 + $0xf8] sm:$0xff]
        %v680 = vld [vmem:[#allocation7 + $0x100] sm:$0xff]
        %v681 = vld [vmem:[#allocation7 + $0x108] sm:$0xff]
        %v682 = vld [vmem:[#allocation7 + $0x110] sm:$0xff]
        %v683 = vld [vmem:[#allocation7 + $0x118] sm:$0xff]
        %v684 = vld [vmem:[#allocation7 + $0x120] sm:$0xff]
        %v685 = vld [vmem:[#allocation7 + $0x128] sm:$0xff]
        %v686 = vld [vmem:[#allocation7 + $0x130] sm:$0xff]
        %v687 = vld [vmem:[#allocation7 + $0x138] sm:$0xff]
        %v688 = vld [vmem:[#allocation7 + $0x140] sm:$0xff]
        %v689 = vld [vmem:[#allocation7 + $0x148] sm:$0xff]
        %v690 = vld [vmem:[#allocation7 + $0x150] sm:$0xff]
        %v691 = vld [vmem:[#allocation7 + $0x158] sm:$0xff]
        %v692 = vld [vmem:[#allocation7 + $0x160] sm:$0xff]
        %v693 = vld [vmem:[#allocation7 + $0x168] sm:$0xff]
        %v694 = vld [vmem:[#allocation7 + $0x170] sm:$0xff]
        %v695 = vld [vmem:[#allocation7 + $0x178] sm:$0xff]
        %v696 = vld [vmem:[#allocation7 + $0x180] sm:$0xff]
        %v697 = vld [vmem:[#allocation7 + $0x188] sm:$0xff]
        %v698 = vld [vmem:[#allocation7 + $0x190] sm:$0xff]
        %v699 = vld [vmem:[#allocation7 + $0x198] sm:$0xff]
        %v700 = vld [vmem:[#allocation7 + $0x1a0] sm:$0xff]
        %v701 = vld [vmem:[#allocation7 + $0x1a8] sm:$0xff]
        %v702 = vld [vmem:[#allocation7 + $0x1b0] sm:$0xff]
        %v703 = vld [vmem:[#allocation7 + $0x1b8] sm:$0xff]
        %v704 = vld [vmem:[#allocation7 + $0x1c0] sm:$0xff]
        %v705 = vld [vmem:[#allocation7 + $0x1c8] sm:$0xff]
        %v706 = vld [vmem:[#allocation7 + $0x1d0] sm:$0xff]
        %v707 = vld [vmem:[#allocation7 + $0x1d8] sm:$0xff]
        %v708 = vld [vmem:[#allocation7 + $0x1e0] sm:$0xff]
        %v709 = vld [vmem:[#allocation7 + $0x1e8] sm:$0xff]
        %v710 = vld [vmem:[#allocation7 + $0x1f0] sm:$0xff]
        %v711 = vld [vmem:[#allocation7 + $0x1f8] sm:$0xff]
        %v712 = vld [vmem:[#allocation7 + $0x200] sm:$0xff]
        %v713 = vld [vmem:[#allocation7 + $0x208] sm:$0xff]
        %v714 = vld [vmem:[#allocation7 + $0x210] sm:$0xff]
        %v715 = vld [vmem:[#allocation7 + $0x218] sm:$0xff]
        %v716 = vld [vmem:[#allocation7 + $0x220] sm:$0xff]
        %v717 = vld [vmem:[#allocation7 + $0x228] sm:$0xff]
        %v718 = vld [vmem:[#allocation7 + $0x230] sm:$0xff]
        %v719 = vld [vmem:[#allocation7 + $0x238] sm:$0xff]
        %v720 = vld [vmem:[#allocation7 + $0x240] sm:$0xff]
        %v721 = vld [vmem:[#allocation7 + $0x248] sm:$0xff]
        %v722 = vld [vmem:[#allocation7 + $0x250] sm:$0xff]
        %v723 = vld [vmem:[#allocation7 + $0x258] sm:$0xff]
        %v724 = vld [vmem:[#allocation7 + $0x260] sm:$0xff]
        %v725 = vld [vmem:[#allocation7 + $0x268] sm:$0xff]
        %v726 = vld [vmem:[#allocation7 + $0x270] sm:$0xff]
        %v727 = vld [vmem:[#allocation7 + $0x278] sm:$0xff]
        %v728 = vld [vmem:[#allocation7 + $0x280] sm:$0xff]
        %v729 = vld [vmem:[#allocation7 + $0x288] sm:$0xff]
        %v730 = vld [vmem:[#allocation7 + $0x290] sm:$0xff]
        %v731 = vld [vmem:[#allocation7 + $0x298] sm:$0xff]
        %v732 = vld [vmem:[#allocation7 + $0x2a0] sm:$0xff]
        %v733 = vld [vmem:[#allocation7 + $0x2a8] sm:$0xff]
        %v734 = vld [vmem:[#allocation7 + $0x2b0] sm:$0xff]
        %v735 = vld [vmem:[#allocation7 + $0x2b8] sm:$0xff]
        %v736 = vld [vmem:[#allocation7 + $0x2c0] sm:$0xff]
        %v737 = vld [vmem:[#allocation7 + $0x2c8] sm:$0xff]
        %v738 = vld [vmem:[#allocation7 + $0x2d0] sm:$0xff]
        %v739 = vld [vmem:[#allocation7 + $0x2d8] sm:$0xff]
        %v740 = vld [vmem:[#allocation7 + $0x2e0] sm:$0xff]
        %v741 = vld [vmem:[#allocation7 + $0x2e8] sm:$0xff]
        %v742 = vld [vmem:[#allocation7 + $0x2f0] sm:$0xff]
        %v743 = vld [vmem:[#allocation7 + $0x2f8] sm:$0xff]
        %v744 = vld [vmem:[#allocation7 + $0x300] sm:$0xff]
        %v745 = vld [vmem:[#allocation7 + $0x308] sm:$0xff]
        %v746 = vld [vmem:[#allocation7 + $0x310] sm:$0xff]
        %v747 = vld [vmem:[#allocation7 + $0x318] sm:$0xff]
        %v748 = vld [vmem:[#allocation7 + $0x320] sm:$0xff]
        %v749 = vld [vmem:[#allocation7 + $0x328] sm:$0xff]
        %v750 = vld [vmem:[#allocation7 + $0x330] sm:$0xff]
        %v751 = vld [vmem:[#allocation7 + $0x338] sm:$0xff]
        %v752 = vld [vmem:[#allocation7 + $0x340] sm:$0xff]
        %v753 = vld [vmem:[#allocation7 + $0x348] sm:$0xff]
        %v754 = vld [vmem:[#allocation7 + $0x350] sm:$0xff]
        %v755 = vld [vmem:[#allocation7 + $0x358] sm:$0xff]
        %v756 = vld [vmem:[#allocation7 + $0x360] sm:$0xff]
        %v757 = vld [vmem:[#allocation7 + $0x368] sm:$0xff]
        %v758 = vld [vmem:[#allocation7 + $0x370] sm:$0xff]
        %v759 = vld [vmem:[#allocation7 + $0x378] sm:$0xff]
        %v760 = vld [vmem:[#allocation7 + $0x380] sm:$0xff]
        %v761 = vld [vmem:[#allocation7 + $0x388] sm:$0xff]
        %v762 = vld [vmem:[#allocation7 + $0x390] sm:$0xff]
        %v763 = vld [vmem:[#allocation7 + $0x398] sm:$0xff]
        %v764 = vld [vmem:[#allocation7 + $0x3a0] sm:$0xff]
        %v765 = vld [vmem:[#allocation7 + $0x3a8] sm:$0xff]
        %v766 = vld [vmem:[#allocation7 + $0x3b0] sm:$0xff]
        %v767 = vld [vmem:[#allocation7 + $0x3b8] sm:$0xff]
        %v768 = vld [vmem:[#allocation7 + $0x3c0] sm:$0xff]
        %v769 = vld [vmem:[#allocation7 + $0x3c8] sm:$0xff]
        %v770 = vld [vmem:[#allocation7 + $0x3d0] sm:$0xff]
        %v771 = vld [vmem:[#allocation7 + $0x3d8] sm:$0xff]
        %v772 = vld [vmem:[#allocation7 + $0x3e0] sm:$0xff]
        %v773 = vld [vmem:[#allocation7 + $0x3e8] sm:$0xff]
        %v774 = vld [vmem:[#allocation7 + $0x3f0] sm:$0xff]
        %v775 = vld [vmem:[#allocation7 + $0x3f8] sm:$0xff]
        %v776 = vld [vmem:[#allocation7 + $0x400] sm:$0xff]
        %v777 = vld [vmem:[#allocation7 + $0x408] sm:$0xff]
        %v778 = vld [vmem:[#allocation7 + $0x410] sm:$0xff]
        %v779 = vld [vmem:[#allocation7 + $0x418] sm:$0xff]
        %v780 = vld [vmem:[#allocation7 + $0x420] sm:$0xff]
        %v781 = vld [vmem:[#allocation7 + $0x428] sm:$0xff]
        %v782 = vld [vmem:[#allocation7 + $0x430] sm:$0xff]
        %v783 = vld [vmem:[#allocation7 + $0x438] sm:$0xff]
        %v784 = vld [vmem:[#allocation7 + $0x440] sm:$0xff]
        %v785 = vld [vmem:[#allocation7 + $0x448] sm:$0xff]
        %v786 = vld [vmem:[#allocation7 + $0x450] sm:$0xff]
        %v787 = vld [vmem:[#allocation7 + $0x458] sm:$0xff]
        %v788 = vld [vmem:[#allocation7 + $0x460] sm:$0xff]
        %v789 = vld [vmem:[#allocation7 + $0x468] sm:$0xff]
        %v790 = vld [vmem:[#allocation7 + $0x470] sm:$0xff]
        %v791 = vld [vmem:[#allocation7 + $0x478] sm:$0xff]
        %v792 = vld [vmem:[#allocation7 + $0x480] sm:$0xff]
        %v793 = vld [vmem:[#allocation7 + $0x488] sm:$0xff]
        %v794 = vld [vmem:[#allocation7 + $0x490] sm:$0xff]
        %v795 = vld [vmem:[#allocation7 + $0x498] sm:$0xff]
        %v796 = vld [vmem:[#allocation7 + $0x4a0] sm:$0xff]
        %v797 = vld [vmem:[#allocation7 + $0x4a8] sm:$0xff]
        %v798 = vld [vmem:[#allocation7 + $0x4b0] sm:$0xff]
        %v799 = vld [vmem:[#allocation7 + $0x4b8] sm:$0xff]
        %v800 = vld [vmem:[#allocation7 + $0x4c0] sm:$0xff]
        %v801 = vld [vmem:[#allocation7 + $0x4c8] sm:$0xff]
        %v802 = vld [vmem:[#allocation7 + $0x4d0] sm:$0xff]
        %v803 = vld [vmem:[#allocation7 + $0x4d8] sm:$0xff]
        %v804 = vld [vmem:[#allocation7 + $0x4e0] sm:$0xff]
        %v805 = vld [vmem:[#allocation7 + $0x4e8] sm:$0xff]
        %v806 = vld [vmem:[#allocation7 + $0x4f0] sm:$0xff]
        %v807 = vld [vmem:[#allocation7 + $0x4f8] sm:$0xff]
        %v808 = vld [vmem:[#allocation7 + $0x500] sm:$0xff]
        %v809 = vld [vmem:[#allocation7 + $0x508] sm:$0xff]
        %v810 = vld [vmem:[#allocation7 + $0x510] sm:$0xff]
        %v811 = vld [vmem:[#allocation7 + $0x518] sm:$0xff]
        %v812 = vld [vmem:[#allocation7 + $0x520] sm:$0xff]
        %v813 = vld [vmem:[#allocation7 + $0x528] sm:$0xff]
        %v814 = vld [vmem:[#allocation7 + $0x530] sm:$0xff]
        %v815 = vld [vmem:[#allocation7 + $0x538] sm:$0xff]
        %v816 = vld [vmem:[#allocation7 + $0x540] sm:$0xff]
        %v817 = vld [vmem:[#allocation7 + $0x548] sm:$0xff]
        %v818 = vld [vmem:[#allocation7 + $0x550] sm:$0xff]
        %v819 = vld [vmem:[#allocation7 + $0x558] sm:$0xff]
        %v820 = vld [vmem:[#allocation7 + $0x560] sm:$0xff]
        %v821 = vld [vmem:[#allocation7 + $0x568] sm:$0xff]
        %v822 = vld [vmem:[#allocation7 + $0x570] sm:$0xff]
        %v823 = vld [vmem:[#allocation7 + $0x578] sm:$0xff]
        %v824 = vld [vmem:[#allocation7 + $0x580] sm:$0xff]
        %v825 = vld [vmem:[#allocation7 + $0x588] sm:$0xff]
        %v826 = vld [vmem:[#allocation7 + $0x590] sm:$0xff]
        %v827 = vld [vmem:[#allocation7 + $0x598] sm:$0xff]
        %v828 = vld [vmem:[#allocation7 + $0x5a0] sm:$0xff]
        %v829 = vld [vmem:[#allocation7 + $0x5a8] sm:$0xff]
        %v830 = vld [vmem:[#allocation7 + $0x5b0] sm:$0xff]
        %v831 = vld [vmem:[#allocation7 + $0x5b8] sm:$0xff]
        %v832 = vld [vmem:[#allocation7 + $0x5c0] sm:$0xff]
        %v833 = vld [vmem:[#allocation7 + $0x5c8] sm:$0xff]
        %v834 = vld [vmem:[#allocation7 + $0x5d0] sm:$0xff]
        %v835 = vld [vmem:[#allocation7 + $0x5d8] sm:$0xff]
        %v836 = vld [vmem:[#allocation7 + $0x5e0] sm:$0xff]
        %v837 = vld [vmem:[#allocation7 + $0x5e8] sm:$0xff]
        %v838 = vld [vmem:[#allocation7 + $0x5f0] sm:$0xff]
        %v839 = vld [vmem:[#allocation7 + $0x5f8] sm:$0xff]
        %v840 = vpack.c.bf16 %v650, %v648
        %v841 = vpack.c.bf16 %v651, %v649
        %v842 = vpack.c.bf16 %v654, %v652
        %v843 = vpack.c.bf16 %v655, %v653
        %v844 = vpack.c.bf16 %v658, %v656
        %v845 = vpack.c.bf16 %v659, %v657
        %v846 = vpack.c.bf16 %v662, %v660
        %v847 = vpack.c.bf16 %v663, %v661
        %v848 = vpack.c.bf16 %v666, %v664
        %v849 = vpack.c.bf16 %v667, %v665
        %v850 = vpack.c.bf16 %v670, %v668
        %v851 = vpack.c.bf16 %v671, %v669
        %v852 = vpack.c.bf16 %v674, %v672
        %v853 = vpack.c.bf16 %v675, %v673
        %v854 = vpack.c.bf16 %v678, %v676
        %v855 = vpack.c.bf16 %v679, %v677
        %v856 = vpack.c.bf16 %v682, %v680
        %v857 = vpack.c.bf16 %v683, %v681
        %v858 = vpack.c.bf16 %v686, %v684
        %v859 = vpack.c.bf16 %v687, %v685
        %v860 = vpack.c.bf16 %v690, %v688
        %v861 = vpack.c.bf16 %v691, %v689
        %v862 = vpack.c.bf16 %v694, %v692
        %v863 = vpack.c.bf16 %v695, %v693
        %v864 = vpack.c.bf16 %v698, %v696
        %v865 = vpack.c.bf16 %v699, %v697
        %v866 = vpack.c.bf16 %v702, %v700
        %v867 = vpack.c.bf16 %v703, %v701
        %v868 = vpack.c.bf16 %v706, %v704
        %v869 = vpack.c.bf16 %v707, %v705
        %v870 = vpack.c.bf16 %v710, %v708
        %v871 = vpack.c.bf16 %v711, %v709
        %v872 = vpack.c.bf16 %v714, %v712
        %v873 = vpack.c.bf16 %v715, %v713
        %v874 = vpack.c.bf16 %v718, %v716
        %v875 = vpack.c.bf16 %v719, %v717
        %v876 = vpack.c.bf16 %v722, %v720
        %v877 = vpack.c.bf16 %v723, %v721
        %v878 = vpack.c.bf16 %v726, %v724
        %v879 = vpack.c.bf16 %v727, %v725
        %v880 = vpack.c.bf16 %v730, %v728
        %v881 = vpack.c.bf16 %v731, %v729
        %v882 = vpack.c.bf16 %v734, %v732
        %v883 = vpack.c.bf16 %v735, %v733
        %v884 = vpack.c.bf16 %v738, %v736
        %v885 = vpack.c.bf16 %v739, %v737
        %v886 = vpack.c.bf16 %v742, %v740
        %v887 = vpack.c.bf16 %v743, %v741
        %v888 = vpack.c.bf16 %v746, %v744
        %v889 = vpack.c.bf16 %v747, %v745
        %v890 = vpack.c.bf16 %v750, %v748
        %v891 = vpack.c.bf16 %v751, %v749
        %v892 = vpack.c.bf16 %v754, %v752
        %v893 = vpack.c.bf16 %v755, %v753
        %v894 = vpack.c.bf16 %v758, %v756
        %v895 = vpack.c.bf16 %v759, %v757
        %v896 = vpack.c.bf16 %v762, %v760
        %v897 = vpack.c.bf16 %v763, %v761
        %v898 = vpack.c.bf16 %v766, %v764
        %v899 = vpack.c.bf16 %v767, %v765
        %v900 = vpack.c.bf16 %v770, %v768
        %v901 = vpack.c.bf16 %v771, %v769
        %v902 = vpack.c.bf16 %v774, %v772
        %v903 = vpack.c.bf16 %v775, %v773
        %v904 = vpack.c.bf16 %v778, %v776
        %v905 = vpack.c.bf16 %v779, %v777
        %v906 = vpack.c.bf16 %v782, %v780
        %v907 = vpack.c.bf16 %v783, %v781
        %v908 = vpack.c.bf16 %v786, %v784
        %v909 = vpack.c.bf16 %v787, %v785
        %v910 = vpack.c.bf16 %v790, %v788
        %v911 = vpack.c.bf16 %v791, %v789
        %v912 = vpack.c.bf16 %v794, %v792
        %v913 = vpack.c.bf16 %v795, %v793
        %v914 = vpack.c.bf16 %v798, %v796
        %v915 = vpack.c.bf16 %v799, %v797
        %v916 = vpack.c.bf16 %v802, %v800
        %v917 = vpack.c.bf16 %v803, %v801
        %v918 = vpack.c.bf16 %v806, %v804
        %v919 = vpack.c.bf16 %v807, %v805
        %v920 = vpack.c.bf16 %v810, %v808
        %v921 = vpack.c.bf16 %v811, %v809
        %v922 = vpack.c.bf16 %v814, %v812
        %v923 = vpack.c.bf16 %v815, %v813
        %v924 = vpack.c.bf16 %v818, %v816
        %v925 = vpack.c.bf16 %v819, %v817
        %v926 = vpack.c.bf16 %v822, %v820
        %v927 = vpack.c.bf16 %v823, %v821
        %v928 = vpack.c.bf16 %v826, %v824
        %v929 = vpack.c.bf16 %v827, %v825
        %v930 = vpack.c.bf16 %v830, %v828
        %v931 = vpack.c.bf16 %v831, %v829
        %v932 = vpack.c.bf16 %v834, %v832
        %v933 = vpack.c.bf16 %v835, %v833
        %v934 = vpack.c.bf16 %v838, %v836
        %v935 = vpack.c.bf16 %v839, %v837
        %v936 = vld [vmem:[%s4] sm:$0x3]
        %v938 = vlaneseq
        %v939 = vshrl.u32 %v938, 7
        %v940 = vsub.s32 0, %v939
        %v941 = vrot.slane %v936, %v940
        %v942 = vlaneseq
        %v943 = vshrl.u32 %v942, 7
        %v944 = vsub.s32 1, %v943
        %v945 = vrot.slane %v936, %v944
        %948 = vmatprep.subr.bf16.mxu0 %v841
        %949 = vmatpush1.bf16.msra.mxu0 %v840
        %950 = vmatprep.subr.bf16.mxu0 %v843
        %951 = vmatpush1.bf16.msra.mxu0 %v842
        %952 = vmatprep.subr.bf16.mxu0 %v845
        %953 = vmatpush1.bf16.msra.mxu0 %v844
        %954 = vmatprep.subr.bf16.mxu0 %v847
        %955 = vmatpush1.bf16.msra.mxu0 %v846
        %956 = vmatprep.subr.bf16.mxu0 %v849
        %957 = vmatpush1.bf16.msra.mxu0 %v848
        %958 = vmatprep.subr.bf16.mxu0 %v851
        %959 = vmatpush1.bf16.msra.mxu0 %v850
        %960 = vmatprep.subr.bf16.mxu0 %v853
        %961 = vmatpush1.bf16.msra.mxu0 %v852
        %962 = vmatprep.subr.bf16.mxu0 %v855
        %963 = vmatpush1.bf16.msra.mxu0 %v854
        %964 = vmatprep.subr.bf16.mxu0 %v857
        %965 = vmatpush1.bf16.msra.mxu0 %v856
        %966 = vmatprep.subr.bf16.mxu0 %v859
        %967 = vmatpush1.bf16.msra.mxu0 %v858
        %968 = vmatprep.subr.bf16.mxu0 %v861
        %969 = vmatpush1.bf16.msra.mxu0 %v860
        %970 = vmatprep.subr.bf16.mxu0 %v863
        %971 = vmatpush1.bf16.msra.mxu0 %v862
        %972 = vmatprep.subr.bf16.mxu0 %v865
        %973 = vmatpush1.bf16.msra.mxu0 %v864
        %974 = vmatprep.subr.bf16.mxu0 %v867
        %975 = vmatpush1.bf16.msra.mxu0 %v866
        %976 = vmatprep.subr.bf16.mxu0 %v869
        %977 = vmatpush1.bf16.msra.mxu0 %v868
        %978 = vmatprep.subr.bf16.mxu0 %v871
        %979 = vmatpush1.bf16.msra.mxu0 %v870
        %980 = vmatprep.mubr.bf16.mxu0 %v643
        %981 = vmatmul.mubr.bf16.gmra.mrb[0].mxu0 %v642
        %v982 = vpop.f32.mrb[0].mxu0
        %v983 = vadd.f32 %v941, %v982
        %v984 = vpop.f32.mrb[0].mxu0
        %v985 = vadd.f32 %v945, %v984
        %v986 = vpop.f32.mrb[0].mxu0
        %v987 = vadd.f32 %v941, %v986
        %v988 = vpop.f32.mrb[0].mxu0
        %v989 = vadd.f32 %v945, %v988
        %990 = vdwg.mxu0
        %991 = vmatprep.subr.bf16.mxu0 %v873
        %992 = vmatpush1.bf16.msra.mxu0 %v872
        %993 = vmatprep.subr.bf16.mxu0 %v875
        %994 = vmatpush1.bf16.msra.mxu0 %v874
        %995 = vmatprep.subr.bf16.mxu0 %v877
        %996 = vmatpush1.bf16.msra.mxu0 %v876
        %997 = vmatprep.subr.bf16.mxu0 %v879
        %998 = vmatpush1.bf16.msra.mxu0 %v878
        %999 = vmatprep.subr.bf16.mxu0 %v881
        %1000 = vmatpush1.bf16.msra.mxu0 %v880
        %1001 = vmatprep.subr.bf16.mxu0 %v883
        %1002 = vmatpush1.bf16.msra.mxu0 %v882
        %1003 = vmatprep.subr.bf16.mxu0 %v885
        %1004 = vmatpush1.bf16.msra.mxu0 %v884
        %1005 = vmatprep.subr.bf16.mxu0 %v887
        %1006 = vmatpush1.bf16.msra.mxu0 %v886
        %1007 = vmatprep.subr.bf16.mxu0 %v889
        %1008 = vmatpush1.bf16.msra.mxu0 %v888
        %1009 = vmatprep.subr.bf16.mxu0 %v891
        %1010 = vmatpush1.bf16.msra.mxu0 %v890
        %1011 = vmatprep.subr.bf16.mxu0 %v893
        %1012 = vmatpush1.bf16.msra.mxu0 %v892
        %1013 = vmatprep.subr.bf16.mxu0 %v895
        %1014 = vmatpush1.bf16.msra.mxu0 %v894
        %1015 = vmatprep.subr.bf16.mxu0 %v897
        %1016 = vmatpush1.bf16.msra.mxu0 %v896
        %1017 = vmatprep.subr.bf16.mxu0 %v899
        %1018 = vmatpush1.bf16.msra.mxu0 %v898
        %1019 = vmatprep.subr.bf16.mxu0 %v901
        %1020 = vmatpush1.bf16.msra.mxu0 %v900
        %1021 = vmatprep.subr.bf16.mxu0 %v903
        %1022 = vmatpush1.bf16.msra.mxu0 %v902
        %1023 = vmatprep.mubr.bf16.mxu0 %v645
        %1024 = vmatmul.mubr.bf16.gmra.mrb[0].mxu0 %v644
        %v1025 = vpop.f32.mrb[0].mxu0
        %v1026 = vadd.f32 %v983, %v1025
        %v1027 = vpop.f32.mrb[0].mxu0
        %v1028 = vadd.f32 %v985, %v1027
        %v1029 = vpop.f32.mrb[0].mxu0
        %v1030 = vadd.f32 %v987, %v1029
        %v1031 = vpop.f32.mrb[0].mxu0
        %v1032 = vadd.f32 %v989, %v1031
        %1033 = vdwg.mxu0
        %1034 = vmatprep.subr.bf16.mxu0 %v905
        %1035 = vmatpush1.bf16.msra.mxu0 %v904
        %1036 = vmatprep.subr.bf16.mxu0 %v907
        %1037 = vmatpush1.bf16.msra.mxu0 %v906
        %1038 = vmatprep.subr.bf16.mxu0 %v909
        %1039 = vmatpush1.bf16.msra.mxu0 %v908
        %1040 = vmatprep.subr.bf16.mxu0 %v911
        %1041 = vmatpush1.bf16.msra.mxu0 %v910
        %1042 = vmatprep.subr.bf16.mxu0 %v913
        %1043 = vmatpush1.bf16.msra.mxu0 %v912
        %1044 = vmatprep.subr.bf16.mxu0 %v915
        %1045 = vmatpush1.bf16.msra.mxu0 %v914
        %1046 = vmatprep.subr.bf16.mxu0 %v917
        %1047 = vmatpush1.bf16.msra.mxu0 %v916
        %1048 = vmatprep.subr.bf16.mxu0 %v919
        %1049 = vmatpush1.bf16.msra.mxu0 %v918
        %1050 = vmatprep.subr.bf16.mxu0 %v921
        %1051 = vmatpush1.bf16.msra.mxu0 %v920
        %1052 = vmatprep.subr.bf16.mxu0 %v923
        %1053 = vmatpush1.bf16.msra.mxu0 %v922
        %1054 = vmatprep.subr.bf16.mxu0 %v925
        %1055 = vmatpush1.bf16.msra.mxu0 %v924
        %1056 = vmatprep.subr.bf16.mxu0 %v927
        %1057 = vmatpush1.bf16.msra.mxu0 %v926
        %1058 = vmatprep.subr.bf16.mxu0 %v929
        %1059 = vmatpush1.bf16.msra.mxu0 %v928
        %1060 = vmatprep.subr.bf16.mxu0 %v931
        %1061 = vmatpush1.bf16.msra.mxu0 %v930
        %1062 = vmatprep.subr.bf16.mxu0 %v933
        %1063 = vmatpush1.bf16.msra.mxu0 %v932
        %1064 = vmatprep.subr.bf16.mxu0 %v935
        %1065 = vmatpush1.bf16.msra.mxu0 %v934
        %1066 = vmatprep.mubr.bf16.mxu0 %v647
        %1067 = vmatmul.mubr.bf16.gmra.mrb[0].mxu0 %v646
        %v1068 = vpop.f32.mrb[0].mxu0
        %v1069 = vadd.f32 %v1026, %v1068
        %v1070 = vpop.f32.mrb[0].mxu0
        %v1071 = vadd.f32 %v1028, %v1070
        %v1072 = vpop.f32.mrb[0].mxu0
        %v1073 = vadd.f32 %v1030, %v1072
        %v1074 = vpop.f32.mrb[0].mxu0
        %v1075 = vadd.f32 %v1032, %v1074
        %1076 = vdwg.mxu0
        %v1077 = vmax.f32 %v1069, 0.0
        %v1078 = vmax.f32 %v1071, 0.0
        %v1079 = vmax.f32 %v1073, 0.0
        %v1080 = vmax.f32 %v1075, 0.0
        %v1081 = vpack.c.bf16 %v1079, %v1077
        %v1082 = vpack.c.bf16 %v1080, %v1078
        %v1083 = vld [vmem:[#allocation8] sm:$0xff]
        %v1084 = vld [vmem:[#allocation8 + $0x8] sm:$0xff]
        %v1085 = vld [vmem:[#allocation8 + $0x10] sm:$0xff]
        %v1086 = vld [vmem:[#allocation8 + $0x18] sm:$0xff]
        %v1087 = vld [vmem:[#allocation8 + $0x20] sm:$0xff]
        %v1088 = vld [vmem:[#allocation8 + $0x28] sm:$0xff]
        %v1089 = vld [vmem:[#allocation8 + $0x30] sm:$0xff]
        %v1090 = vld [vmem:[#allocation8 + $0x38] sm:$0xff]
        %v1091 = vld [vmem:[#allocation8 + $0x40] sm:$0xff]
        %v1092 = vld [vmem:[#allocation8 + $0x48] sm:$0xff]
        %v1093 = vld [vmem:[#allocation8 + $0x50] sm:$0xff]
        %v1094 = vld [vmem:[#allocation8 + $0x58] sm:$0xff]
        %v1095 = vld [vmem:[#allocation8 + $0x60] sm:$0xff]
        %v1096 = vld [vmem:[#allocation8 + $0x68] sm:$0xff]
        %v1097 = vld [vmem:[#allocation8 + $0x70] sm:$0xff]
        %v1098 = vld [vmem:[#allocation8 + $0x78] sm:$0xff]
        %v1099 = vld [vmem:[#allocation8 + $0x80] sm:$0xff]
        %v1100 = vld [vmem:[#allocation8 + $0x88] sm:$0xff]
        %v1101 = vld [vmem:[#allocation8 + $0x90] sm:$0xff]
        %v1102 = vld [vmem:[#allocation8 + $0x98] sm:$0xff]
        %v1103 = vld [vmem:[#allocation8 + $0xa0] sm:$0xff]
        %v1104 = vld [vmem:[#allocation8 + $0xa8] sm:$0xff]
        %v1105 = vld [vmem:[#allocation8 + $0xb0] sm:$0xff]
        %v1106 = vld [vmem:[#allocation8 + $0xb8] sm:$0xff]
        %v1107 = vld [vmem:[#allocation8 + $0xc0] sm:$0xff]
        %v1108 = vld [vmem:[#allocation8 + $0xc8] sm:$0xff]
        %v1109 = vld [vmem:[#allocation8 + $0xd0] sm:$0xff]
        %v1110 = vld [vmem:[#allocation8 + $0xd8] sm:$0xff]
        %v1111 = vld [vmem:[#allocation8 + $0xe0] sm:$0xff]
        %v1112 = vld [vmem:[#allocation8 + $0xe8] sm:$0xff]
        %v1113 = vld [vmem:[#allocation8 + $0xf0] sm:$0xff]
        %v1114 = vld [vmem:[#allocation8 + $0xf8] sm:$0xff]
        %v1115 = vpack.c.bf16 %v1084, %v1083
        %v1116 = vpack.c.bf16 %v1086, %v1085
        %v1117 = vpack.c.bf16 %v1088, %v1087
        %v1118 = vpack.c.bf16 %v1090, %v1089
        %v1119 = vpack.c.bf16 %v1092, %v1091
        %v1120 = vpack.c.bf16 %v1094, %v1093
        %v1121 = vpack.c.bf16 %v1096, %v1095
        %v1122 = vpack.c.bf16 %v1098, %v1097
        %v1123 = vpack.c.bf16 %v1100, %v1099
        %v1124 = vpack.c.bf16 %v1102, %v1101
        %v1125 = vpack.c.bf16 %v1104, %v1103
        %v1126 = vpack.c.bf16 %v1106, %v1105
        %v1127 = vpack.c.bf16 %v1108, %v1107
        %v1128 = vpack.c.bf16 %v1110, %v1109
        %v1129 = vpack.c.bf16 %v1112, %v1111
        %v1130 = vpack.c.bf16 %v1114, %v1113
        %v1131 = vld [vmem:[%s6] sm:$0x1]
        %v1133 = vlaneseq
        %v1134 = vshrl.u32 %v1133, 7
        %v1135 = vsub.s32 0, %v1134
        %v1136 = vrot.slane %v1131, %v1135
        %1138 = vmatprep.subr.bf16.mxu0 0
        %1139 = vmatpush1.bf16.msra.mxu0 %v1115
        %1140 = vmatprep.subr.bf16.mxu0 0
        %1141 = vmatpush1.bf16.msra.mxu0 %v1116
        %1142 = vmatprep.subr.bf16.mxu0 0
        %1143 = vmatpush1.bf16.msra.mxu0 %v1117
        %1144 = vmatprep.subr.bf16.mxu0 0
        %1145 = vmatpush1.bf16.msra.mxu0 %v1118
        %1146 = vmatprep.subr.bf16.mxu0 0
        %1147 = vmatpush1.bf16.msra.mxu0 %v1119
        %1148 = vmatprep.subr.bf16.mxu0 0
        %1149 = vmatpush1.bf16.msra.mxu0 %v1120
        %1150 = vmatprep.subr.bf16.mxu0 0
        %1151 = vmatpush1.bf16.msra.mxu0 %v1121
        %1152 = vmatprep.subr.bf16.mxu0 0
        %1153 = vmatpush1.bf16.msra.mxu0 %v1122
        %1154 = vmatprep.subr.bf16.mxu0 0
        %1155 = vmatpush1.bf16.msra.mxu0 %v1123
        %1156 = vmatprep.subr.bf16.mxu0 0
        %1157 = vmatpush1.bf16.msra.mxu0 %v1124
        %1158 = vmatprep.subr.bf16.mxu0 0
        %1159 = vmatpush1.bf16.msra.mxu0 %v1125
        %1160 = vmatprep.subr.bf16.mxu0 0
        %1161 = vmatpush1.bf16.msra.mxu0 %v1126
        %1162 = vmatprep.subr.bf16.mxu0 0
        %1163 = vmatpush1.bf16.msra.mxu0 %v1127
        %1164 = vmatprep.subr.bf16.mxu0 0
        %1165 = vmatpush1.bf16.msra.mxu0 %v1128
        %1166 = vmatprep.subr.bf16.mxu0 0
        %1167 = vmatpush1.bf16.msra.mxu0 %v1129
        %1168 = vmatprep.subr.bf16.mxu0 0
        %1169 = vmatpush1.bf16.msra.mxu0 %v1130
        %1170 = vmatprep.mubr.bf16.mxu0 %v1082
        %1171 = vmatmul.mubr.bf16.gmra.mrb[0].mxu0 %v1081
        %v1172 = vpop.f32.mrb[0].mxu0
        %v1173 = vadd.f32 %v1136, %v1172
        %v1174 = vpop.f32.mrb[0].mxu0
        %v1175 = vpop.f32.mrb[0].mxu0
        %v1176 = vadd.f32 %v1136, %v1175
        %v1177 = vpop.f32.mrb[0].mxu0
        %1178 = vdwg.mxu0
        %v1179 = vmax.f32 %v1173, 0.0
        %v1180 = vmax.f32 %v1176, 0.0
        %v1181 = vpack.c.bf16 %v1180, %v1179
        %v1182 = vld [vmem:[#allocation10] sm:$0xff]
        %v1183 = vld [vmem:[#allocation10 + $0x8] sm:$0xff]
        %v1184 = vld [vmem:[#allocation10 + $0x10] sm:$0xff]
        %v1185 = vld [vmem:[#allocation10 + $0x18] sm:$0xff]
        %v1186 = vld [vmem:[#allocation10 + $0x20] sm:$0xff]
        %v1187 = vld [vmem:[#allocation10 + $0x28] sm:$0xff]
        %v1188 = vld [vmem:[#allocation10 + $0x30] sm:$0xff]
        %v1189 = vld [vmem:[#allocation10 + $0x38] sm:$0xff]
        %v1190 = vld [vmem:[#allocation10 + $0x40] sm:$0xff]
        %v1191 = vld [vmem:[#allocation10 + $0x48] sm:$0xff]
        %v1192 = vld [vmem:[#allocation10 + $0x50] sm:$0xff]
        %v1193 = vld [vmem:[#allocation10 + $0x58] sm:$0xff]
        %v1194 = vld [vmem:[#allocation10 + $0x60] sm:$0xff]
        %v1195 = vld [vmem:[#allocation10 + $0x68] sm:$0xff]
        %v1196 = vld [vmem:[#allocation10 + $0x70] sm:$0xff]
        %v1197 = vld [vmem:[#allocation10 + $0x78] sm:$0xff]
        %v1198 = vpack.c.bf16 %v1183, %v1182
        %v1199 = vpack.c.bf16 %v1185, %v1184
        %v1200 = vpack.c.bf16 %v1187, %v1186
        %v1201 = vpack.c.bf16 %v1189, %v1188
        %v1202 = vpack.c.bf16 %v1191, %v1190
        %v1203 = vpack.c.bf16 %v1193, %v1192
        %v1204 = vpack.c.bf16 %v1195, %v1194
        %v1205 = vpack.c.bf16 %v1197, %v1196
        %v1206 = vld [vmem:[%s8] sm:$0x1]
        %v1208 = vlaneseq
        %v1209 = vshrl.u32 %v1208, 7
        %v1210 = vsub.s32 0, %v1209
        %v1211 = vrot.slane %v1206, %v1210
        %1213 = vmatprep.subr.bf16.mxu0 0
        %1214 = vmatpush1.bf16.msra.mxu0 %v1198
        %1215 = vmatprep.subr.bf16.mxu0 0
        %1216 = vmatpush1.bf16.msra.mxu0 %v1199
        %1217 = vmatprep.subr.bf16.mxu0 0
        %1218 = vmatpush1.bf16.msra.mxu0 %v1200
        %1219 = vmatprep.subr.bf16.mxu0 0
        %1220 = vmatpush1.bf16.msra.mxu0 %v1201
        %1221 = vmatprep.subr.bf16.mxu0 0
        %1222 = vmatpush1.bf16.msra.mxu0 %v1202
        %1223 = vmatprep.subr.bf16.mxu0 0
        %1224 = vmatpush1.bf16.msra.mxu0 %v1203
        %1225 = vmatprep.subr.bf16.mxu0 0
        %1226 = vmatpush1.bf16.msra.mxu0 %v1204
        %1227 = vmatprep.subr.bf16.mxu0 0
        %1228 = vmatpush1.bf16.msra.mxu0 %v1205
        %1229 = vmatprep.subr.bf16.mxu0 0
        %1230 = vmatpush1.bf16.msra.mxu0 0
        %1231 = vmatprep.subr.bf16.mxu0 0
        %1232 = vmatpush1.bf16.msra.mxu0 0
        %1233 = vmatprep.subr.bf16.mxu0 0
        %1234 = vmatpush1.bf16.msra.mxu0 0
        %1235 = vmatprep.subr.bf16.mxu0 0
        %1236 = vmatpush1.bf16.msra.mxu0 0
        %1237 = vmatprep.subr.bf16.mxu0 0
        %1238 = vmatpush1.bf16.msra.mxu0 0
        %1239 = vmatprep.subr.bf16.mxu0 0
        %1240 = vmatpush1.bf16.msra.mxu0 0
        %1241 = vmatprep.subr.bf16.mxu0 0
        %1242 = vmatpush1.bf16.msra.mxu0 0
        %1243 = vmatprep.subr.bf16.mxu0 0
        %1244 = vmatpush1.bf16.msra.mxu0 0
        %1245 = vmatprep.mubr.bf16.mxu0 0
        %1246 = vmatmul.mubr.bf16.gmra.mrb[0].mxu0 %v1181
        %v1247 = vpop.f32.mrb[0].mxu0
        %v1248 = vadd.f32 %v1211, %v1247
        %v1249 = vpop.f32.mrb[0].mxu0
        %v1250 = vpop.f32.mrb[0].mxu0
        %v1251 = vadd.f32 %v1211, %v1250
        %v1252 = vpop.f32.mrb[0].mxu0
        %1253 = vdwg.mxu0
        %1254 = vst [vmem:[%s414] sm:$0xff] %v1248
        %1255 = vst [vmem:[%s414 + $0x8] sm:$0xff] %v1251
        %s1256 = sand.u32 %s230, 1
        %s1257 = scalar_lea.sflag [#allocation4], %s1256
        %s1258 = sand.u32 %s230, 1
        %s1259 = smul.addr %s1258, 16
        %s1260 = scalar_lea.vmem [#allocation11], %s1259
        // Predicated region
        $region77: #{tpu_custom_call.1} parent=55 // pred_check
          %p1261 = pneg %p240
        $region78: #{tpu_custom_call.1} parent=55 // pred_check_branch
          %1263 = sbr.rel (%p1261) target = $region80
        $region79: #{tpu_custom_call.1} parent=55 // pred_region
          %s1264 = smul.u32 2, %s28
          %s1265 = ssub.s32 3, %s1264
          %p1266 = scmp.lt.s32.totalorder %s1265, 2
          %s1267 = scalar_select %p1266, %s1265, 2
          %s1268 = smul.u32 128, %s1267
          %s1270 = ssub.s32 256, %s1268
          %1271 = vsyncadd %s1257, %s1270
          %p1272 = scmp.ne.s32.totalorder 0, %s1268
          %s1273 = smul.addr %s1264, 128
          %s1274 = scalar_lea.hbm %s9, %s1273
          %s1275 = smul.u32 8, %s1267
          %s1276 = sshll.u32 %s1260, 4
          %s1277 = int_to_ptr.vmem [resolvable:$true] %s1276
          %s1278 = sshll.u32 %s1275, 4
          %1282 = dma.vmem_to_hbm [thread:$0]  (%p1272), %s1277, %s1278, %s1274, %s1257, 128, 128, 8
        $region80: #{tpu_custom_call.1} parent=55 // pred_fallthru
          _
      $region56: #{tpu_custom_call.1} parent=5 // pred_fallthru
        _
      %p1283 = scmp.le.s32.totalorder 2, %s23
      // Predicated region
      $region81: #{tpu_custom_call.1} parent=5 // pred_check
        %p1284 = pneg %p1283
      $region82: #{tpu_custom_call.1} parent=5 // pred_check_branch
        %1286 = sbr.rel (%p1284) target = $region84
      $region83: #{tpu_custom_call.1} parent=5 // pred_region
        %s1287 = ssub.s32 %s23, 2
        // Predicated region
        $region85: #{tpu_custom_call.1} parent=83 // pred_check
          %p1288 = pneg %p246
        $region86: #{tpu_custom_call.1} parent=83 // pred_check_branch
          %1290 = sbr.rel (%p1288) target = $region88
        $region87: #{tpu_custom_call.1} parent=83 // pred_region
          %s1291 = sand.u32 %s231, 1
          %s1292 = scalar_lea.sflag [#allocation4], %s1291
          %s1293 = sand.u32 %s231, 1
          %s1294 = smul.addr %s1293, 16
          %s1295 = scalar_lea.vmem [#allocation11], %s1294
          %1296 = dma.done %s1292, 256
        $region88: #{tpu_custom_call.1} parent=83 // pred_fallthru
          _
      $region84: #{tpu_custom_call.1} parent=5 // pred_fallthru
        _
    $region6: #{tpu_custom_call.1} parent=1 // loop_footer
      %s27 = sadd.s32 1, %s23
    $region7: #{tpu_custom_call.1} parent=1 // loop_footer_branch
      %22 = sbr.rel target = $region3
    $region8: #{tpu_custom_call.1} parent=1 // loop_exit
      _
    %1297 = vsyncpa [#allocation3], 1
    %s1298 = scalar_lea.sflag [#allocation3], 1
    %1299 = vsyncpa %s1298, 1
    %1300 = vsyncpa [#allocation6], 1
    %1301 = vsyncpa [#allocation9], 1
    %1302 = vsyncpa [#allocation4], 1
    %s1303 = scalar_lea.sflag [#allocation4], 1
    %1304 = vsyncpa %s1303, 1

</llo_original>
